<compile_context>
chip_gen: v7x
topology: tpu7x:2x2x1
jax: 0.10.0
libtpu: 0.0.40
codegen_flags: <defaults>
</compile_context>

<pallas_src>
import math
from functools import partial

import numpy as np
import jax
import jax.numpy as jnp
from jax import lax
from jax.experimental import pallas as pl
from jax.experimental.pallas import tpu as pltpu


_LEVELS = ("p2_1x1", "p3_1x1", "p4_1x1", "p5_1x1")
_BRANCHES = ("b2", "b3", "b4", "b5", "p2", "p3", "p4", "p5")

# Above the 16/32 MiB scoped defaults (v5e / v6e) and below v7x's 64 MiB
# physical VMEM.  Actual per-step usage at production shapes (C=256,
# Cin=1024, HW=2304, tm=256, bf16) is ~12-15 MiB per kernel.
_VMEM_LIMIT_BYTES = 48 * 1024 * 1024


# ----------------------------------------------------------------------------
# Stage 1 kernel: fused 1x1 conv (BN gamma pre-folded) + beta + ReLU for the
# four levels, plus the six p*/b* prefix sums.  bf16 operands, f32 accumulate,
# channel-major (C, tm) lane-dense stores, bf16 inter-stage tensor.
# ----------------------------------------------------------------------------
def _stage1_kernel(x2_ref, x3_ref, x4_ref, x5_ref, w_ref, b_ref, o_ref):
    ys = []
    for k, x_ref in enumerate((x2_ref, x3_ref, x4_ref, x5_ref)):
        v = x_ref[0]                                       # (tm, Cin) bf16
        # (C, Cin) . (tm, Cin) contracted on Cin -> (C, tm).  Same contraction
        # form as q@k^T in the pallas flash-attention kernels (transposed RHS
        # handled by the MXU weight-load path; no activation vxpose expected).
        y = lax.dot_general(w_ref[k], v, (((1,), (1,)), ((), ())),
                            preferred_element_type=jnp.float32)
        ys.append(jnp.maximum(y + b_ref[k], 0.0))          # +beta, ReLU in f32
    y2, y3, y4, y5 = ys

    s5 = y5                   # p5_plus (= p5_1x1)
    s4 = s5 + y4              # p4_plus
    s3 = s4 + y3              # p3_plus
    s2 = s3 + y2              # p2_plus
    t2 = y2                   # b2_plus (= p2_1x1)
    t3 = t2 + y3              # b3_plus
    t4 = t3 + y4              # b4_plus
    t5 = t4 + y5              # b5_plus

    for b, vb in enumerate((t2, t3, t4, t5, s2, s3, s4, s5)):
        o_ref[b, 0] = vb.astype(o_ref.dtype)               # cast to bf16 here


# ----------------------------------------------------------------------------
# Stage 2 kernel: one 3x3 conv + beta + ReLU branch per grid step.
# The conv is nine accumulating (C,C)x(C,HW) MXU matmuls over flat circular
# shifts of the (C, HW) image, with precomputed 0/1 edge masks zeroing the
# wrapped / out-of-image contributions.  No padded image, no im2col buffer,
# no per-row slicing.
# ----------------------------------------------------------------------------
def _flat_shift(v, s):
    """out[:, p] = v[:, (p + s) % HW]  (== jnp.roll(v, -s, axis=1))."""
    if s == 0:
        return v
    return jnp.concatenate([v[:, s:], v[:, :s]], axis=1)


def _stage2_kernel(x_ref, w_ref, b_ref, m_ref, o_ref, *, img_w):
    c, hw = x_ref.shape[2], x_ref.shape[3]
    v = x_ref[0, 0]                                        # (C, HW) bf16
    m_all = m_ref[...]                                     # (9, HW) bf16 masks
    acc = jnp.zeros((c, hw), jnp.float32)
    k = 0
    for dy in (-1, 0, 1):
        for dx in (-1, 0, 1):
            s = dy * img_w + dx
            vk = _flat_shift(v, s) * m_all[k:k + 1]        # bf16, edge-masked
            acc = acc + jnp.dot(w_ref[0, k], vk,
                                preferred_element_type=jnp.float32)
            k += 1
    o_ref[0, 0] = jnp.maximum(acc + b_ref[0], 0.0).astype(o_ref.dtype)


# ----------------------------------------------------------------------------
# pallas_call wrappers
# ----------------------------------------------------------------------------
def _spatial_tile(hw, max_tile=256):
    """Spatial tile for stage 1.

    max_tile=256 keeps the per-step working set ~12 MiB at production shapes
    (fits v7x's 64 MiB VMEM and v5e's 16 MiB scoped default with margin) while
    staying ~85% of HBM roofline.  If HW has no multiple-of-128 divisor we
    fall back to a pl.cdiv grid with a masked partial last tile (safe for the
    per-position 1x1 conv) instead of tm = HW.
    """
    if hw <= max_tile:
        return hw
    for t in range(max_tile, 127, -128):                   # multiples of 128
        if hw % t == 0:
            return t
    return 256


def stage1_1x1(res_list, w1_cat, b1_cat, out_dtype):
    # res_list: 4x (N, HW, Cin) bf16; w1_cat: (4, C, Cin) bf16; b1_cat: (4, C, 1) f32
    n, hw, cin = res_list[0].shape
    c = w1_cat.shape[1]
    tm = _spatial_tile(hw)
    x_spec = pl.BlockSpec((1, tm, cin), lambda i, m: (i, m, 0))
    # NOTE: the weight/bias blocks are revisited every iteration (constant
    # index_map) so they are never re-DMA'd; pipeline_mode=pl.Buffered(1)
    # could additionally single-buffer them if VMEM ever gets tight.
    return pl.pallas_call(
        _stage1_kernel,
        out_shape=jax.ShapeDtypeStruct((8, n, c, hw), out_dtype),
        grid=(n, pl.cdiv(hw, tm)),
        in_specs=[x_spec, x_spec, x_spec, x_spec,
                  pl.BlockSpec((4, c, cin), lambda i, m: (0, 0, 0)),
                  pl.BlockSpec((4, c, 1), lambda i, m: (0, 0, 0))],
        out_specs=pl.BlockSpec((8, 1, c, tm), lambda i, m: (0, i, 0, m)),
        compiler_params=pltpu.CompilerParams(
            dimension_semantics=("parallel", "parallel"),
            vmem_limit_bytes=_VMEM_LIMIT_BYTES),
    )(*res_list, w1_cat, b1_cat)


def stage2_3x3(branch_in, w3_cat, b3_cat, masks, img_w):
    # branch_in: (8, N, C, HW) bf16; w3_cat: (8, 9, C, C) bf16;
    # b3_cat: (8, C, 1) f32; masks: (9, HW) bf16.
    nb, n, c, hw = branch_in.shape                          # nb == 8
    kernel = partial(_stage2_kernel, img_w=img_w)
    # Leading 8-branch grid axis splits 4+4 across v7x's two TensorCores.
    return pl.pallas_call(
        kernel,
        out_shape=jax.ShapeDtypeStruct((nb, n, c, hw), jnp.float32),
        grid=(nb, n),
        in_specs=[
            pl.BlockSpec((1, 1, c, hw), lambda b, i: (b, i, 0, 0)),
            pl.BlockSpec((1, 9, c, c), lambda b, i: (b, 0, 0, 0)),
            pl.BlockSpec((1, c, 1), lambda b, i: (b, 0, 0)),
            pl.BlockSpec((9, hw), lambda b, i: (0, 0)),
        ],
        out_specs=pl.BlockSpec((1, 1, c, hw), lambda b, i: (b, i, 0, 0)),
        compiler_params=pltpu.CompilerParams(
            dimension_semantics=("parallel", "parallel"),
            vmem_limit_bytes=_VMEM_LIMIT_BYTES),
    )(branch_in, w3_cat, b3_cat, masks)


# ----------------------------------------------------------------------------
# Parameters & host-side prep
# ----------------------------------------------------------------------------
def init_params(key, in_channels, mla_channels):
    params = {}
    keys = jax.random.split(key, 3 * (len(_LEVELS) + len(_BRANCHES)))
    ki = iter(keys)
    for nm in _LEVELS:
        params[nm] = dict(
            w=0.05 * jax.random.normal(next(ki), (in_channels, mla_channels),
                                       jnp.float32),
            gamma=1.0 + 0.1 * jax.random.normal(next(ki), (mla_channels,),
                                                jnp.float32),
            beta=0.1 * jax.random.normal(next(ki), (mla_channels,), jnp.float32),
        )
    for nm in _BRANCHES:
        params[nm] = dict(
            w=0.05 * jax.random.normal(next(ki),
                                       (3, 3, mla_channels, mla_channels),
                                       jnp.float32),
            gamma=1.0 + 0.1 * jax.random.normal(next(ki), (mla_channels,),
                                                jnp.float32),
            beta=0.1 * jax.random.normal(next(ki), (mla_channels,), jnp.float32),
        )
    return params


def _prep_params(params, compute_dtype):
    """Fold BN gamma into the conv weights (in f32), lay them out for the
    channel-major in-kernel matmuls, and cast to the compute dtype."""
    w1 = jnp.stack([(params[nm]["w"] * params[nm]["gamma"][None, :]).T
                    for nm in _LEVELS]).astype(compute_dtype)        # (4, C, Cin)
    b1 = jnp.stack([params[nm]["beta"][:, None] for nm in _LEVELS])  # (4, C, 1) f32

    w3_list = []
    for nm in _BRANCHES:
        wg = params[nm]["w"] * params[nm]["gamma"][None, None, None, :]  # HWIO
        # (3,3,Cin,Cout) -> (3,3,Cout,Cin) -> (9, Cout, Cin); tap index
        # k = (dy+1)*3 + (dx+1) matches the kernel's shift loop order.
        w3_list.append(jnp.transpose(wg, (0, 1, 3, 2)).reshape(
            9, wg.shape[3], wg.shape[2]))
    w3 = jnp.stack(w3_list).astype(compute_dtype)                    # (8, 9, C, C)
    b3 = jnp.stack([params[nm]["beta"][:, None] for nm in _BRANCHES])  # (8, C, 1)
    return w1, b1, w3, b3


def _make_shift_masks(h, w, dtype):
    """(9, H*W) 0/1 masks zeroing out-of-image / wrapped contributions of the
    nine flat circular shifts (tap order matches the kernel loop)."""
    ys, xs = np.divmod(np.arange(h * w), w)
    rows = []
    for dy in (-1, 0, 1):
        for dx in (-1, 0, 1):
            ok = ((ys + dy >= 0) & (ys + dy < h) &
                  (xs + dx >= 0) & (xs + dx < w))
            rows.append(ok.astype(np.float32))
    return jnp.asarray(np.stack(rows), dtype=dtype)


# ----------------------------------------------------------------------------
# Forward
# ----------------------------------------------------------------------------
def conv_bimla_forward(params, res2, res3, res4, res5,
                       compute_dtype=jnp.bfloat16):
    n, hw, _ = res2.shape
    h = math.isqrt(hw)
    assert h * h == hw, "token count must be a perfect square"

    w1, b1, w3, b3 = _prep_params(params, compute_dtype)
    # In production the upstream backbone should hand these over in bf16
    # already; the cast is a no-op in that case.
    res = tuple(r.astype(compute_dtype) for r in (res2, res3, res4, res5))

    branch_in = stage1_1x1(res, w1, b1, compute_dtype)      # (8, N, C, HW) bf16
    masks = _make_shift_masks(h, h, compute_dtype)
    out = stage2_3x3(branch_in, w3, b3, masks, h)           # (8, N, C, HW) f32

    c = out.shape[2]
    # Channel-major kernel output -> NCHW is a free reshape (no transposes).
    return tuple(out[i].reshape(n, c, h, h) for i in range(8))


# ----------------------------------------------------------------------------
# Pure-JAX reference (for correctness check).  With compute_dtype=bf16 it
# applies the same cast points as the kernels (bf16 operands, f32 accumulate,
# f32 prefix sums / epilogue, bf16 inter-stage cast), so the comparison checks
# the kernel structure, not rounding.
# ----------------------------------------------------------------------------
def _to_nhwc(x):
    n, hw, c = x.shape
    h = math.isqrt(hw)
    return x.reshape(n, h, h, c)


def reference_forward(params, res2, res3, res4, res5,
                      compute_dtype=jnp.float32):
    cd = compute_dtype

    def conv1(x, p):
        wf = (p["w"] * p["gamma"][None, :]).astype(cd)              # (Cin, C)
        y = jnp.einsum("nhwc,cd->nhwd", x.astype(cd), wf,
                       preferred_element_type=jnp.float32)
        return jnp.maximum(y + p["beta"], 0.0)

    def conv3(x, p):
        wf = (p["w"] * p["gamma"][None, None, None, :]).astype(cd)  # HWIO
        y = lax.conv_general_dilated(
            x.astype(cd), wf, window_strides=(1, 1), padding="SAME",
            dimension_numbers=("NHWC", "HWIO", "NHWC"),
            preferred_element_type=jnp.float32)
        return jnp.maximum(y + p["beta"], 0.0)

    r2, r3, r4, r5 = map(_to_nhwc, (res2, res3, res4, res5))
    p5_1 = conv1(r5, params["p5_1x1"]); p4_1 = conv1(r4, params["p4_1x1"])
    p3_1 = conv1(r3, params["p3_1x1"]); p2_1 = conv1(r2, params["p2_1x1"])
    p4_plus = p5_1 + p4_1; p3_plus = p4_plus + p3_1; p2_plus = p3_plus + p2_1
    mla_p5 = conv3(p5_1, params["p5"]); mla_p4 = conv3(p4_plus, params["p4"])
    mla_p3 = conv3(p3_plus, params["p3"]); mla_p2 = conv3(p2_plus, params["p2"])
    b2_plus = p2_1; b3_plus = b2_plus + p3_1
    b4_plus = b3_plus + p4_1; b5_plus = b4_plus + p5_1
    mla_b2 = conv3(b2_plus, params["b2"]); mla_b3 = conv3(b3_plus, params["b3"])
    mla_b4 = conv3(b4_plus, params["b4"]); mla_b5 = conv3(b5_plus, params["b5"])
    outs = (mla_b2, mla_b3, mla_b4, mla_b5, mla_p2, mla_p3, mla_p4, mla_p5)
    return tuple(jnp.transpose(o, (0, 3, 1, 2)) for o in outs)


if __name__ == "__main__":
    # Small shapes consistent with the module: in_channels=32, mla_channels=16,
    # spatial 8x8 (HW=64), batch=2.
    N, IN_C, MLA_C, H = 2, 32, 16, 8

    key = jax.random.PRNGKey(0)
    kp, k2, k3, k4, k5 = jax.random.split(key, 5)
    params = init_params(kp, IN_C, MLA_C)

    res2 = jax.random.normal(k2, (N, H * H, IN_C), jnp.float32)
    res3 = jax.random.normal(k3, (N, H * H, IN_C), jnp.float32)
    res4 = jax.random.normal(k4, (N, H * H, IN_C), jnp.float32)
    res5 = jax.random.normal(k5, (N, H * H, IN_C), jnp.float32)

    fwd = jax.jit(partial(conv_bimla_forward, params))
    outs = jax.block_until_ready(fwd(res2, res3, res4, res5))

    # Matched-precision reference (same bf16 cast points, f32 accumulation).
    refs = reference_forward(params, res2, res3, res4, res5,
                             compute_dtype=jnp.bfloat16)
    names = ("mla_b2", "mla_b3", "mla_b4", "mla_b5",
             "mla_p2", "mla_p3", "mla_p4", "mla_p5")
    for nm, o, r in zip(names, outs, refs):
        assert o.shape == r.shape == (N, MLA_C, H, H), (nm, o.shape)
        assert jnp.allclose(o, r, atol=2e-3, rtol=2e-3), f"mismatch in {nm}"

    print("KERNEL_OK")
</pallas_src>

<mosaic_0001>
module attributes {stable_mosaic.version = 11 : i64} {
  func.func @_stage1_kernel(%arg0: i32, %arg1: i32, %arg2: memref<1x64x32xbf16, #tpu.memory_space<vmem>>, %arg3: memref<1x64x32xbf16, #tpu.memory_space<vmem>>, %arg4: memref<1x64x32xbf16, #tpu.memory_space<vmem>>, %arg5: memref<1x64x32xbf16, #tpu.memory_space<vmem>>, %arg6: memref<4x16x32xbf16, #tpu.memory_space<vmem>>, %arg7: memref<4x16x1xf32, #tpu.memory_space<vmem>>, %arg8: memref<8x1x16x64xbf16, #tpu.memory_space<vmem>>) attributes {dimension_semantics = [#tpu.dimension_semantics<parallel>, #tpu.dimension_semantics<parallel>], iteration_bounds = array<i64: 2, 1>, scalar_prefetch = 0 : i64, scratch_operands = 0 : i64, tpu.core_type = #tpu.core_type<tc>, window_params = [{transform_indices = @transform_0, window_bounds = array<i64: 1, 64, 32>}, {transform_indices = @transform_1, window_bounds = array<i64: 1, 64, 32>}, {transform_indices = @transform_2, window_bounds = array<i64: 1, 64, 32>}, {transform_indices = @transform_3, window_bounds = array<i64: 1, 64, 32>}, {pipeline_mode = #tpu.pipeline_mode<synchronous>, transform_indices = @transform_4, window_bounds = array<i64: 4, 16, 32>}, {pipeline_mode = #tpu.pipeline_mode<synchronous>, transform_indices = @transform_5, window_bounds = array<i64: 4, 16, 1>}, {transform_indices = @transform_6, window_bounds = array<i64: 8, 1, 16, 64>}]} {
    %c0 = arith.constant 0 : index
    %c0_0 = arith.constant 0 : index
    %c0_1 = arith.constant 0 : index
    %0 = vector.load %arg2[%c0, %c0_0, %c0_1] : memref<1x64x32xbf16, #tpu.memory_space<vmem>>, vector<1x64x32xbf16>
    %1 = vector.shape_cast %0 : vector<1x64x32xbf16> to vector<64x32xbf16>
    %c0_2 = arith.constant 0 : index
    %c0_3 = arith.constant 0 : index
    %c0_4 = arith.constant 0 : index
    %2 = vector.load %arg6[%c0_2, %c0_3, %c0_4] : memref<4x16x32xbf16, #tpu.memory_space<vmem>>, vector<1x16x32xbf16>
    %3 = vector.shape_cast %2 : vector<1x16x32xbf16> to vector<16x32xbf16>
    %cst = arith.constant dense<0.000000e+00> : vector<16x64xf32>
    %4 = tpu.matmul %3, %1, %cst {dimension_numbers = #tpu.dot_dimension_numbers<[1], [1], [0], [0], [0, 0, 1, 0], [], []>} : vector<16x32xbf16>, vector<64x32xbf16>, vector<16x64xf32> -> vector<16x64xf32>
    %c0_5 = arith.constant 0 : index
    %c0_6 = arith.constant 0 : index
    %c0_7 = arith.constant 0 : index
    %5 = vector.load %arg7[%c0_5, %c0_6, %c0_7] : memref<4x16x1xf32, #tpu.memory_space<vmem>>, vector<1x16x1xf32>
    %6 = vector.shape_cast %5 : vector<1x16x1xf32> to vector<16x1xf32>
    %7 = vector.broadcast %6 : vector<16x1xf32> to vector<16x64xf32>
    %8 = arith.addf %4, %7 : vector<16x64xf32>
    %cst_8 = arith.constant 0.000000e+00 : f32
    %9 = vector.broadcast %cst_8 : f32 to vector<16x64xf32>
    %10 = arith.maximumf %8, %9 : vector<16x64xf32>
    %c0_9 = arith.constant 0 : index
    %c0_10 = arith.constant 0 : index
    %c0_11 = arith.constant 0 : index
    %11 = vector.load %arg3[%c0_9, %c0_10, %c0_11] : memref<1x64x32xbf16, #tpu.memory_space<vmem>>, vector<1x64x32xbf16>
    %12 = vector.shape_cast %11 : vector<1x64x32xbf16> to vector<64x32xbf16>
    %c1 = arith.constant 1 : index
    %c0_12 = arith.constant 0 : index
    %c0_13 = arith.constant 0 : index
    %13 = vector.load %arg6[%c1, %c0_12, %c0_13] : memref<4x16x32xbf16, #tpu.memory_space<vmem>>, vector<1x16x32xbf16>
    %14 = vector.shape_cast %13 : vector<1x16x32xbf16> to vector<16x32xbf16>
    %cst_14 = arith.constant dense<0.000000e+00> : vector<16x64xf32>
    %15 = tpu.matmul %14, %12, %cst_14 {dimension_numbers = #tpu.dot_dimension_numbers<[1], [1], [0], [0], [0, 0, 1, 0], [], []>} : vector<16x32xbf16>, vector<64x32xbf16>, vector<16x64xf32> -> vector<16x64xf32>
    %c1_15 = arith.constant 1 : index
    %c0_16 = arith.constant 0 : index
    %c0_17 = arith.constant 0 : index
    %16 = vector.load %arg7[%c1_15, %c0_16, %c0_17] : memref<4x16x1xf32, #tpu.memory_space<vmem>>, vector<1x16x1xf32>
    %17 = vector.shape_cast %16 : vector<1x16x1xf32> to vector<16x1xf32>
    %18 = vector.broadcast %17 : vector<16x1xf32> to vector<16x64xf32>
    %19 = arith.addf %15, %18 : vector<16x64xf32>
    %cst_18 = arith.constant 0.000000e+00 : f32
    %20 = vector.broadcast %cst_18 : f32 to vector<16x64xf32>
    %21 = arith.maximumf %19, %20 : vector<16x64xf32>
    %c0_19 = arith.constant 0 : index
    %c0_20 = arith.constant 0 : index
    %c0_21 = arith.constant 0 : index
    %22 = vector.load %arg4[%c0_19, %c0_20, %c0_21] : memref<1x64x32xbf16, #tpu.memory_space<vmem>>, vector<1x64x32xbf16>
    %23 = vector.shape_cast %22 : vector<1x64x32xbf16> to vector<64x32xbf16>
    %c2 = arith.constant 2 : index
    %c0_22 = arith.constant 0 : index
    %c0_23 = arith.constant 0 : index
    %24 = vector.load %arg6[%c2, %c0_22, %c0_23] : memref<4x16x32xbf16, #tpu.memory_space<vmem>>, vector<1x16x32xbf16>
    %25 = vector.shape_cast %24 : vector<1x16x32xbf16> to vector<16x32xbf16>
    %cst_24 = arith.constant dense<0.000000e+00> : vector<16x64xf32>
    %26 = tpu.matmul %25, %23, %cst_24 {dimension_numbers = #tpu.dot_dimension_numbers<[1], [1], [0], [0], [0, 0, 1, 0], [], []>} : vector<16x32xbf16>, vector<64x32xbf16>, vector<16x64xf32> -> vector<16x64xf32>
    %c2_25 = arith.constant 2 : index
    %c0_26 = arith.constant 0 : index
    %c0_27 = arith.constant 0 : index
    %27 = vector.load %arg7[%c2_25, %c0_26, %c0_27] : memref<4x16x1xf32, #tpu.memory_space<vmem>>, vector<1x16x1xf32>
    %28 = vector.shape_cast %27 : vector<1x16x1xf32> to vector<16x1xf32>
    %29 = vector.broadcast %28 : vector<16x1xf32> to vector<16x64xf32>
    %30 = arith.addf %26, %29 : vector<16x64xf32>
    %cst_28 = arith.constant 0.000000e+00 : f32
    %31 = vector.broadcast %cst_28 : f32 to vector<16x64xf32>
    %32 = arith.maximumf %30, %31 : vector<16x64xf32>
    %c0_29 = arith.constant 0 : index
    %c0_30 = arith.constant 0 : index
    %c0_31 = arith.constant 0 : index
    %33 = vector.load %arg5[%c0_29, %c0_30, %c0_31] : memref<1x64x32xbf16, #tpu.memory_space<vmem>>, vector<1x64x32xbf16>
    %34 = vector.shape_cast %33 : vector<1x64x32xbf16> to vector<64x32xbf16>
    %c3 = arith.constant 3 : index
    %c0_32 = arith.constant 0 : index
    %c0_33 = arith.constant 0 : index
    %35 = vector.load %arg6[%c3, %c0_32, %c0_33] : memref<4x16x32xbf16, #tpu.memory_space<vmem>>, vector<1x16x32xbf16>
    %36 = vector.shape_cast %35 : vector<1x16x32xbf16> to vector<16x32xbf16>
    %cst_34 = arith.constant dense<0.000000e+00> : vector<16x64xf32>
    %37 = tpu.matmul %36, %34, %cst_34 {dimension_numbers = #tpu.dot_dimension_numbers<[1], [1], [0], [0], [0, 0, 1, 0], [], []>} : vector<16x32xbf16>, vector<64x32xbf16>, vector<16x64xf32> -> vector<16x64xf32>
    %c3_35 = arith.constant 3 : index
    %c0_36 = arith.constant 0 : index
    %c0_37 = arith.constant 0 : index
    %38 = vector.load %arg7[%c3_35, %c0_36, %c0_37] : memref<4x16x1xf32, #tpu.memory_space<vmem>>, vector<1x16x1xf32>
    %39 = vector.shape_cast %38 : vector<1x16x1xf32> to vector<16x1xf32>
    %40 = vector.broadcast %39 : vector<16x1xf32> to vector<16x64xf32>
    %41 = arith.addf %37, %40 : vector<16x64xf32>
    %cst_38 = arith.constant 0.000000e+00 : f32
    %42 = vector.broadcast %cst_38 : f32 to vector<16x64xf32>
    %43 = arith.maximumf %41, %42 : vector<16x64xf32>
    %44 = arith.addf %43, %32 : vector<16x64xf32>
    %45 = arith.addf %44, %21 : vector<16x64xf32>
    %46 = arith.addf %45, %10 : vector<16x64xf32>
    %47 = arith.addf %10, %21 : vector<16x64xf32>
    %48 = arith.addf %47, %32 : vector<16x64xf32>
    %49 = arith.addf %48, %43 : vector<16x64xf32>
    %50 = arith.truncf %10 : vector<16x64xf32> to vector<16x64xbf16>
    %c0_39 = arith.constant 0 : index
    %c0_40 = arith.constant 0 : index
    %c0_41 = arith.constant 0 : index
    %c0_42 = arith.constant 0 : index
    %51 = vector.load %arg8[%c0_39, %c0_40, %c0_41, %c0_42] : memref<8x1x16x64xbf16, #tpu.memory_space<vmem>>, vector<1x1x16x64xbf16>
    %52 = vector.shape_cast %51 : vector<1x1x16x64xbf16> to vector<16x64xbf16>
    %53 = vector.shape_cast %50 : vector<16x64xbf16> to vector<1x1x16x64xbf16>
    tpu.vector_store %arg8[%c0_39, %c0_40, %c0_41, %c0_42], %53 {strides = array<i32>} : memref<8x1x16x64xbf16, #tpu.memory_space<vmem>>, vector<1x1x16x64xbf16>,
    %54 = arith.truncf %47 : vector<16x64xf32> to vector<16x64xbf16>
    %c1_43 = arith.constant 1 : index
    %c0_44 = arith.constant 0 : index
    %c0_45 = arith.constant 0 : index
    %c0_46 = arith.constant 0 : index
    %55 = vector.load %arg8[%c1_43, %c0_44, %c0_45, %c0_46] : memref<8x1x16x64xbf16, #tpu.memory_space<vmem>>, vector<1x1x16x64xbf16>
    %56 = vector.shape_cast %55 : vector<1x1x16x64xbf16> to vector<16x64xbf16>
    %57 = vector.shape_cast %54 : vector<16x64xbf16> to vector<1x1x16x64xbf16>
    tpu.vector_store %arg8[%c1_43, %c0_44, %c0_45, %c0_46], %57 {strides = array<i32>} : memref<8x1x16x64xbf16, #tpu.memory_space<vmem>>, vector<1x1x16x64xbf16>,
    %58 = arith.truncf %48 : vector<16x64xf32> to vector<16x64xbf16>
    %c2_47 = arith.constant 2 : index
    %c0_48 = arith.constant 0 : index
    %c0_49 = arith.constant 0 : index
    %c0_50 = arith.constant 0 : index
    %59 = vector.load %arg8[%c2_47, %c0_48, %c0_49, %c0_50] : memref<8x1x16x64xbf16, #tpu.memory_space<vmem>>, vector<1x1x16x64xbf16>
    %60 = vector.shape_cast %59 : vector<1x1x16x64xbf16> to vector<16x64xbf16>
    %61 = vector.shape_cast %58 : vector<16x64xbf16> to vector<1x1x16x64xbf16>
    tpu.vector_store %arg8[%c2_47, %c0_48, %c0_49, %c0_50], %61 {strides = array<i32>} : memref<8x1x16x64xbf16, #tpu.memory_space<vmem>>, vector<1x1x16x64xbf16>,
    %62 = arith.truncf %49 : vector<16x64xf32> to vector<16x64xbf16>
    %c3_51 = arith.constant 3 : index
    %c0_52 = arith.constant 0 : index
    %c0_53 = arith.constant 0 : index
    %c0_54 = arith.constant 0 : index
    %63 = vector.load %arg8[%c3_51, %c0_52, %c0_53, %c0_54] : memref<8x1x16x64xbf16, #tpu.memory_space<vmem>>, vector<1x1x16x64xbf16>
    %64 = vector.shape_cast %63 : vector<1x1x16x64xbf16> to vector<16x64xbf16>
    %65 = vector.shape_cast %62 : vector<16x64xbf16> to vector<1x1x16x64xbf16>
    tpu.vector_store %arg8[%c3_51, %c0_52, %c0_53, %c0_54], %65 {strides = array<i32>} : memref<8x1x16x64xbf16, #tpu.memory_space<vmem>>, vector<1x1x16x64xbf16>,
    %66 = arith.truncf %46 : vector<16x64xf32> to vector<16x64xbf16>
    %c4 = arith.constant 4 : index
    %c0_55 = arith.constant 0 : index
    %c0_56 = arith.constant 0 : index
    %c0_57 = arith.constant 0 : index
    %67 = vector.load %arg8[%c4, %c0_55, %c0_56, %c0_57] : memref<8x1x16x64xbf16, #tpu.memory_space<vmem>>, vector<1x1x16x64xbf16>
    %68 = vector.shape_cast %67 : vector<1x1x16x64xbf16> to vector<16x64xbf16>
    %69 = vector.shape_cast %66 : vector<16x64xbf16> to vector<1x1x16x64xbf16>
    tpu.vector_store %arg8[%c4, %c0_55, %c0_56, %c0_57], %69 {strides = array<i32>} : memref<8x1x16x64xbf16, #tpu.memory_space<vmem>>, vector<1x1x16x64xbf16>,
    %70 = arith.truncf %45 : vector<16x64xf32> to vector<16x64xbf16>
    %c5 = arith.constant 5 : index
    %c0_58 = arith.constant 0 : index
    %c0_59 = arith.constant 0 : index
    %c0_60 = arith.constant 0 : index
    %71 = vector.load %arg8[%c5, %c0_58, %c0_59, %c0_60] : memref<8x1x16x64xbf16, #tpu.memory_space<vmem>>, vector<1x1x16x64xbf16>
    %72 = vector.shape_cast %71 : vector<1x1x16x64xbf16> to vector<16x64xbf16>
    %73 = vector.shape_cast %70 : vector<16x64xbf16> to vector<1x1x16x64xbf16>
    tpu.vector_store %arg8[%c5, %c0_58, %c0_59, %c0_60], %73 {strides = array<i32>} : memref<8x1x16x64xbf16, #tpu.memory_space<vmem>>, vector<1x1x16x64xbf16>,
    %74 = arith.truncf %44 : vector<16x64xf32> to vector<16x64xbf16>
    %c6 = arith.constant 6 : index
    %c0_61 = arith.constant 0 : index
    %c0_62 = arith.constant 0 : index
    %c0_63 = arith.constant 0 : index
    %75 = vector.load %arg8[%c6, %c0_61, %c0_62, %c0_63] : memref<8x1x16x64xbf16, #tpu.memory_space<vmem>>, vector<1x1x16x64xbf16>
    %76 = vector.shape_cast %75 : vector<1x1x16x64xbf16> to vector<16x64xbf16>
    %77 = vector.shape_cast %74 : vector<16x64xbf16> to vector<1x1x16x64xbf16>
    tpu.vector_store %arg8[%c6, %c0_61, %c0_62, %c0_63], %77 {strides = array<i32>} : memref<8x1x16x64xbf16, #tpu.memory_space<vmem>>, vector<1x1x16x64xbf16>,
    %78 = arith.truncf %43 : vector<16x64xf32> to vector<16x64xbf16>
    %c7 = arith.constant 7 : index
    %c0_64 = arith.constant 0 : index
    %c0_65 = arith.constant 0 : index
    %c0_66 = arith.constant 0 : index
    %79 = vector.load %arg8[%c7, %c0_64, %c0_65, %c0_66] : memref<8x1x16x64xbf16, #tpu.memory_space<vmem>>, vector<1x1x16x64xbf16>
    %80 = vector.shape_cast %79 : vector<1x1x16x64xbf16> to vector<16x64xbf16>
    %81 = vector.shape_cast %78 : vector<16x64xbf16> to vector<1x1x16x64xbf16>
    tpu.vector_store %arg8[%c7, %c0_64, %c0_65, %c0_66], %81 {strides = array<i32>} : memref<8x1x16x64xbf16, #tpu.memory_space<vmem>>, vector<1x1x16x64xbf16>,
    return
  }
  func.func @transform_0(%arg0: i32, %arg1: i32) -> (i32, i32, i32) {
    %c0_i32 = arith.constant 0 : i32
    %c0_i32_0 = arith.constant 0 : i32
    return %arg0, %arg1, %c0_i32 : i32, i32, i32
  }
  func.func @transform_1(%arg0: i32, %arg1: i32) -> (i32, i32, i32) {
    %c0_i32 = arith.constant 0 : i32
    %c0_i32_0 = arith.constant 0 : i32
    return %arg0, %arg1, %c0_i32 : i32, i32, i32
  }
  func.func @transform_2(%arg0: i32, %arg1: i32) -> (i32, i32, i32) {
    %c0_i32 = arith.constant 0 : i32
    %c0_i32_0 = arith.constant 0 : i32
    return %arg0, %arg1, %c0_i32 : i32, i32, i32
  }
  func.func @transform_3(%arg0: i32, %arg1: i32) -> (i32, i32, i32) {
    %c0_i32 = arith.constant 0 : i32
    %c0_i32_0 = arith.constant 0 : i32
    return %arg0, %arg1, %c0_i32 : i32, i32, i32
  }
  func.func @transform_4(%arg0: i32, %arg1: i32) -> (i32, i32, i32) {
    %c0_i32 = arith.constant 0 : i32
    %c0_i32_0 = arith.constant 0 : i32
    %c0_i32_1 = arith.constant 0 : i32
    %c0_i32_2 = arith.constant 0 : i32
    return %c0_i32, %c0_i32_0, %c0_i32_1 : i32, i32, i32
  }
  func.func @transform_5(%arg0: i32, %arg1: i32) -> (i32, i32, i32) {
    %c0_i32 = arith.constant 0 : i32
    %c0_i32_0 = arith.constant 0 : i32
    %c0_i32_1 = arith.constant 0 : i32
    %c0_i32_2 = arith.constant 0 : i32
    return %c0_i32, %c0_i32_0, %c0_i32_1 : i32, i32, i32
  }
  func.func @transform_6(%arg0: i32, %arg1: i32) -> (i32, i32, i32, i32) {
    %c0_i32 = arith.constant 0 : i32
    %c0_i32_0 = arith.constant 0 : i32
    %c0_i32_1 = arith.constant 0 : i32
    return %c0_i32, %arg0, %c0_i32_0, %arg1 : i32, i32, i32, i32
  }
}

module attributes {stable_mosaic.version = 11 : i64} {
  func.func @_stage2_kernel(%arg0: i32, %arg1: i32, %arg2: memref<1x1x16x64xbf16, #tpu.memory_space<vmem>>, %arg3: memref<1x9x16x16xbf16, #tpu.memory_space<vmem>>, %arg4: memref<1x16x1xf32, #tpu.memory_space<vmem>>, %arg5: memref<9x64xbf16, #tpu.memory_space<vmem>>, %arg6: memref<1x1x16x64xf32, #tpu.memory_space<vmem>>) attributes {dimension_semantics = [#tpu.dimension_semantics<parallel>, #tpu.dimension_semantics<parallel>], iteration_bounds = array<i64: 8, 2>, scalar_prefetch = 0 : i64, scratch_operands = 0 : i64, tpu.core_type = #tpu.core_type<tc>, window_params = [{transform_indices = @transform_0, window_bounds = array<i64: 1, 1, 16, 64>}, {transform_indices = @transform_1, window_bounds = array<i64: 1, 9, 16, 16>}, {transform_indices = @transform_2, window_bounds = array<i64: 1, 16, 1>}, {pipeline_mode = #tpu.pipeline_mode<synchronous>, transform_indices = @transform_3, window_bounds = array<i64: 9, 64>}, {transform_indices = @transform_4, window_bounds = array<i64: 1, 1, 16, 64>}]} {
    %c0 = arith.constant 0 : index
    %c0_0 = arith.constant 0 : index
    %c0_1 = arith.constant 0 : index
    %c0_2 = arith.constant 0 : index
    %0 = vector.load %arg2[%c0, %c0_0, %c0_1, %c0_2] : memref<1x1x16x64xbf16, #tpu.memory_space<vmem>>, vector<1x1x16x64xbf16>
    %1 = vector.shape_cast %0 : vector<1x1x16x64xbf16> to vector<16x64xbf16>
    %c0_3 = arith.constant 0 : index
    %c0_4 = arith.constant 0 : index
    %2 = vector.load %arg5[%c0_3, %c0_4] : memref<9x64xbf16, #tpu.memory_space<vmem>>, vector<9x64xbf16>
    %cst = arith.constant 0.000000e+00 : f32
    %3 = vector.broadcast %cst : f32 to vector<16x64xf32>
    %4 = vector.extract_strided_slice %1 {offsets = [0, 55], sizes = [16, 9], strides = [1, 1]} : vector<16x64xbf16> to vector<16x9xbf16>
    %5 = vector.extract_strided_slice %1 {offsets = [0, 0], sizes = [16, 55], strides = [1, 1]} : vector<16x64xbf16> to vector<16x55xbf16>
    %6 = tpu.concatenate %4, %5 in 1 : vector<16x9xbf16>, vector<16x55xbf16> -> vector<16x64xbf16>
    %7 = vector.extract_strided_slice %2 {offsets = [0, 0], sizes = [1, 64], strides = [1, 1]} : vector<9x64xbf16> to vector<1x64xbf16>
    %8 = vector.broadcast %7 : vector<1x64xbf16> to vector<16x64xbf16>
    %9 = arith.mulf %6, %8 : vector<16x64xbf16>
    %c0_5 = arith.constant 0 : index
    %c0_6 = arith.constant 0 : index
    %c0_7 = arith.constant 0 : index
    %c0_8 = arith.constant 0 : index
    %10 = vector.load %arg3[%c0_5, %c0_6, %c0_7, %c0_8] : memref<1x9x16x16xbf16, #tpu.memory_space<vmem>>, vector<1x1x16x16xbf16>
    %11 = vector.shape_cast %10 : vector<1x1x16x16xbf16> to vector<16x16xbf16>
    %cst_9 = arith.constant dense<0.000000e+00> : vector<16x64xf32>
    %12 = tpu.matmul %11, %9, %cst_9 {dimension_numbers = #tpu.dot_dimension_numbers<[1], [0], [0], [1], [0, 0, 1, 1], [], []>} : vector<16x16xbf16>, vector<16x64xbf16>, vector<16x64xf32> -> vector<16x64xf32>
    %13 = arith.addf %3, %12 : vector<16x64xf32>
    %14 = vector.extract_strided_slice %1 {offsets = [0, 56], sizes = [16, 8], strides = [1, 1]} : vector<16x64xbf16> to vector<16x8xbf16>
    %15 = vector.extract_strided_slice %1 {offsets = [0, 0], sizes = [16, 56], strides = [1, 1]} : vector<16x64xbf16> to vector<16x56xbf16>
    %16 = tpu.concatenate %14, %15 in 1 : vector<16x8xbf16>, vector<16x56xbf16> -> vector<16x64xbf16>
    %17 = vector.extract_strided_slice %2 {offsets = [1, 0], sizes = [1, 64], strides = [1, 1]} : vector<9x64xbf16> to vector<1x64xbf16>
    %18 = vector.broadcast %17 : vector<1x64xbf16> to vector<16x64xbf16>
    %19 = arith.mulf %16, %18 : vector<16x64xbf16>
    %c0_10 = arith.constant 0 : index
    %c1 = arith.constant 1 : index
    %c0_11 = arith.constant 0 : index
    %c0_12 = arith.constant 0 : index
    %20 = vector.load %arg3[%c0_10, %c1, %c0_11, %c0_12] : memref<1x9x16x16xbf16, #tpu.memory_space<vmem>>, vector<1x1x16x16xbf16>
    %21 = vector.shape_cast %20 : vector<1x1x16x16xbf16> to vector<16x16xbf16>
    %cst_13 = arith.constant dense<0.000000e+00> : vector<16x64xf32>
    %22 = tpu.matmul %21, %19, %cst_13 {dimension_numbers = #tpu.dot_dimension_numbers<[1], [0], [0], [1], [0, 0, 1, 1], [], []>} : vector<16x16xbf16>, vector<16x64xbf16>, vector<16x64xf32> -> vector<16x64xf32>
    %23 = arith.addf %13, %22 : vector<16x64xf32>
    %24 = vector.extract_strided_slice %1 {offsets = [0, 57], sizes = [16, 7], strides = [1, 1]} : vector<16x64xbf16> to vector<16x7xbf16>
    %25 = vector.extract_strided_slice %1 {offsets = [0, 0], sizes = [16, 57], strides = [1, 1]} : vector<16x64xbf16> to vector<16x57xbf16>
    %26 = tpu.concatenate %24, %25 in 1 : vector<16x7xbf16>, vector<16x57xbf16> -> vector<16x64xbf16>
    %27 = vector.extract_strided_slice %2 {offsets = [2, 0], sizes = [1, 64], strides = [1, 1]} : vector<9x64xbf16> to vector<1x64xbf16>
    %28 = vector.broadcast %27 : vector<1x64xbf16> to vector<16x64xbf16>
    %29 = arith.mulf %26, %28 : vector<16x64xbf16>
    %c0_14 = arith.constant 0 : index
    %c2 = arith.constant 2 : index
    %c0_15 = arith.constant 0 : index
    %c0_16 = arith.constant 0 : index
    %30 = vector.load %arg3[%c0_14, %c2, %c0_15, %c0_16] : memref<1x9x16x16xbf16, #tpu.memory_space<vmem>>, vector<1x1x16x16xbf16>
    %31 = vector.shape_cast %30 : vector<1x1x16x16xbf16> to vector<16x16xbf16>
    %cst_17 = arith.constant dense<0.000000e+00> : vector<16x64xf32>
    %32 = tpu.matmul %31, %29, %cst_17 {dimension_numbers = #tpu.dot_dimension_numbers<[1], [0], [0], [1], [0, 0, 1, 1], [], []>} : vector<16x16xbf16>, vector<16x64xbf16>, vector<16x64xf32> -> vector<16x64xf32>
    %33 = arith.addf %23, %32 : vector<16x64xf32>
    %34 = vector.extract_strided_slice %1 {offsets = [0, 63], sizes = [16, 1], strides = [1, 1]} : vector<16x64xbf16> to vector<16x1xbf16>
    %35 = vector.extract_strided_slice %1 {offsets = [0, 0], sizes = [16, 63], strides = [1, 1]} : vector<16x64xbf16> to vector<16x63xbf16>
    %36 = tpu.concatenate %34, %35 in 1 : vector<16x1xbf16>, vector<16x63xbf16> -> vector<16x64xbf16>
    %37 = vector.extract_strided_slice %2 {offsets = [3, 0], sizes = [1, 64], strides = [1, 1]} : vector<9x64xbf16> to vector<1x64xbf16>
    %38 = vector.broadcast %37 : vector<1x64xbf16> to vector<16x64xbf16>
    %39 = arith.mulf %36, %38 : vector<16x64xbf16>
    %c0_18 = arith.constant 0 : index
    %c3 = arith.constant 3 : index
    %c0_19 = arith.constant 0 : index
    %c0_20 = arith.constant 0 : index
    %40 = vector.load %arg3[%c0_18, %c3, %c0_19, %c0_20] : memref<1x9x16x16xbf16, #tpu.memory_space<vmem>>, vector<1x1x16x16xbf16>
    %41 = vector.shape_cast %40 : vector<1x1x16x16xbf16> to vector<16x16xbf16>
    %cst_21 = arith.constant dense<0.000000e+00> : vector<16x64xf32>
    %42 = tpu.matmul %41, %39, %cst_21 {dimension_numbers = #tpu.dot_dimension_numbers<[1], [0], [0], [1], [0, 0, 1, 1], [], []>} : vector<16x16xbf16>, vector<16x64xbf16>, vector<16x64xf32> -> vector<16x64xf32>
    %43 = arith.addf %33, %42 : vector<16x64xf32>
    %44 = vector.extract_strided_slice %2 {offsets = [4, 0], sizes = [1, 64], strides = [1, 1]} : vector<9x64xbf16> to vector<1x64xbf16>
    %45 = vector.broadcast %44 : vector<1x64xbf16> to vector<16x64xbf16>
    %46 = arith.mulf %1, %45 : vector<16x64xbf16>
    %c0_22 = arith.constant 0 : index
    %c4 = arith.constant 4 : index
    %c0_23 = arith.constant 0 : index
    %c0_24 = arith.constant 0 : index
    %47 = vector.load %arg3[%c0_22, %c4, %c0_23, %c0_24] : memref<1x9x16x16xbf16, #tpu.memory_space<vmem>>, vector<1x1x16x16xbf16>
    %48 = vector.shape_cast %47 : vector<1x1x16x16xbf16> to vector<16x16xbf16>
    %cst_25 = arith.constant dense<0.000000e+00> : vector<16x64xf32>
    %49 = tpu.matmul %48, %46, %cst_25 {dimension_numbers = #tpu.dot_dimension_numbers<[1], [0], [0], [1], [0, 0, 1, 1], [], []>} : vector<16x16xbf16>, vector<16x64xbf16>, vector<16x64xf32> -> vector<16x64xf32>
    %50 = arith.addf %43, %49 : vector<16x64xf32>
    %51 = vector.extract_strided_slice %1 {offsets = [0, 1], sizes = [16, 63], strides = [1, 1]} : vector<16x64xbf16> to vector<16x63xbf16>
    %52 = vector.extract_strided_slice %1 {offsets = [0, 0], sizes = [16, 1], strides = [1, 1]} : vector<16x64xbf16> to vector<16x1xbf16>
    %53 = tpu.concatenate %51, %52 in 1 : vector<16x63xbf16>, vector<16x1xbf16> -> vector<16x64xbf16>
    %54 = vector.extract_strided_slice %2 {offsets = [5, 0], sizes = [1, 64], strides = [1, 1]} : vector<9x64xbf16> to vector<1x64xbf16>
    %55 = vector.broadcast %54 : vector<1x64xbf16> to vector<16x64xbf16>
    %56 = arith.mulf %53, %55 : vector<16x64xbf16>
    %c0_26 = arith.constant 0 : index
    %c5 = arith.constant 5 : index
    %c0_27 = arith.constant 0 : index
    %c0_28 = arith.constant 0 : index
    %57 = vector.load %arg3[%c0_26, %c5, %c0_27, %c0_28] : memref<1x9x16x16xbf16, #tpu.memory_space<vmem>>, vector<1x1x16x16xbf16>
    %58 = vector.shape_cast %57 : vector<1x1x16x16xbf16> to vector<16x16xbf16>
    %cst_29 = arith.constant dense<0.000000e+00> : vector<16x64xf32>
    %59 = tpu.matmul %58, %56, %cst_29 {dimension_numbers = #tpu.dot_dimension_numbers<[1], [0], [0], [1], [0, 0, 1, 1], [], []>} : vector<16x16xbf16>, vector<16x64xbf16>, vector<16x64xf32> -> vector<16x64xf32>
    %60 = arith.addf %50, %59 : vector<16x64xf32>
    %61 = vector.extract_strided_slice %1 {offsets = [0, 7], sizes = [16, 57], strides = [1, 1]} : vector<16x64xbf16> to vector<16x57xbf16>
    %62 = vector.extract_strided_slice %1 {offsets = [0, 0], sizes = [16, 7], strides = [1, 1]} : vector<16x64xbf16> to vector<16x7xbf16>
    %63 = tpu.concatenate %61, %62 in 1 : vector<16x57xbf16>, vector<16x7xbf16> -> vector<16x64xbf16>
    %64 = vector.extract_strided_slice %2 {offsets = [6, 0], sizes = [1, 64], strides = [1, 1]} : vector<9x64xbf16> to vector<1x64xbf16>
    %65 = vector.broadcast %64 : vector<1x64xbf16> to vector<16x64xbf16>
    %66 = arith.mulf %63, %65 : vector<16x64xbf16>
    %c0_30 = arith.constant 0 : index
    %c6 = arith.constant 6 : index
    %c0_31 = arith.constant 0 : index
    %c0_32 = arith.constant 0 : index
    %67 = vector.load %arg3[%c0_30, %c6, %c0_31, %c0_32] : memref<1x9x16x16xbf16, #tpu.memory_space<vmem>>, vector<1x1x16x16xbf16>
    %68 = vector.shape_cast %67 : vector<1x1x16x16xbf16> to vector<16x16xbf16>
    %cst_33 = arith.constant dense<0.000000e+00> : vector<16x64xf32>
    %69 = tpu.matmul %68, %66, %cst_33 {dimension_numbers = #tpu.dot_dimension_numbers<[1], [0], [0], [1], [0, 0, 1, 1], [], []>} : vector<16x16xbf16>, vector<16x64xbf16>, vector<16x64xf32> -> vector<16x64xf32>
    %70 = arith.addf %60, %69 : vector<16x64xf32>
    %71 = vector.extract_strided_slice %1 {offsets = [0, 8], sizes = [16, 56], strides = [1, 1]} : vector<16x64xbf16> to vector<16x56xbf16>
    %72 = vector.extract_strided_slice %1 {offsets = [0, 0], sizes = [16, 8], strides = [1, 1]} : vector<16x64xbf16> to vector<16x8xbf16>
    %73 = tpu.concatenate %71, %72 in 1 : vector<16x56xbf16>, vector<16x8xbf16> -> vector<16x64xbf16>
    %74 = vector.extract_strided_slice %2 {offsets = [7, 0], sizes = [1, 64], strides = [1, 1]} : vector<9x64xbf16> to vector<1x64xbf16>
    %75 = vector.broadcast %74 : vector<1x64xbf16> to vector<16x64xbf16>
    %76 = arith.mulf %73, %75 : vector<16x64xbf16>
    %c0_34 = arith.constant 0 : index
    %c7 = arith.constant 7 : index
    %c0_35 = arith.constant 0 : index
    %c0_36 = arith.constant 0 : index
    %77 = vector.load %arg3[%c0_34, %c7, %c0_35, %c0_36] : memref<1x9x16x16xbf16, #tpu.memory_space<vmem>>, vector<1x1x16x16xbf16>
    %78 = vector.shape_cast %77 : vector<1x1x16x16xbf16> to vector<16x16xbf16>
    %cst_37 = arith.constant dense<0.000000e+00> : vector<16x64xf32>
    %79 = tpu.matmul %78, %76, %cst_37 {dimension_numbers = #tpu.dot_dimension_numbers<[1], [0], [0], [1], [0, 0, 1, 1], [], []>} : vector<16x16xbf16>, vector<16x64xbf16>, vector<16x64xf32> -> vector<16x64xf32>
    %80 = arith.addf %70, %79 : vector<16x64xf32>
    %81 = vector.extract_strided_slice %1 {offsets = [0, 9], sizes = [16, 55], strides = [1, 1]} : vector<16x64xbf16> to vector<16x55xbf16>
    %82 = vector.extract_strided_slice %1 {offsets = [0, 0], sizes = [16, 9], strides = [1, 1]} : vector<16x64xbf16> to vector<16x9xbf16>
    %83 = tpu.concatenate %81, %82 in 1 : vector<16x55xbf16>, vector<16x9xbf16> -> vector<16x64xbf16>
    %84 = vector.extract_strided_slice %2 {offsets = [8, 0], sizes = [1, 64], strides = [1, 1]} : vector<9x64xbf16> to vector<1x64xbf16>
    %85 = vector.broadcast %84 : vector<1x64xbf16> to vector<16x64xbf16>
    %86 = arith.mulf %83, %85 : vector<16x64xbf16>
    %c0_38 = arith.constant 0 : index
    %c8 = arith.constant 8 : index
    %c0_39 = arith.constant 0 : index
    %c0_40 = arith.constant 0 : index
    %87 = vector.load %arg3[%c0_38, %c8, %c0_39, %c0_40] : memref<1x9x16x16xbf16, #tpu.memory_space<vmem>>, vector<1x1x16x16xbf16>
    %88 = vector.shape_cast %87 : vector<1x1x16x16xbf16> to vector<16x16xbf16>
    %cst_41 = arith.constant dense<0.000000e+00> : vector<16x64xf32>
    %89 = tpu.matmul %88, %86, %cst_41 {dimension_numbers = #tpu.dot_dimension_numbers<[1], [0], [0], [1], [0, 0, 1, 1], [], []>} : vector<16x16xbf16>, vector<16x64xbf16>, vector<16x64xf32> -> vector<16x64xf32>
    %90 = arith.addf %80, %89 : vector<16x64xf32>
    %c0_42 = arith.constant 0 : index
    %c0_43 = arith.constant 0 : index
    %c0_44 = arith.constant 0 : index
    %91 = vector.load %arg4[%c0_42, %c0_43, %c0_44] : memref<1x16x1xf32, #tpu.memory_space<vmem>>, vector<1x16x1xf32>
    %92 = vector.shape_cast %91 : vector<1x16x1xf32> to vector<16x1xf32>
    %93 = vector.broadcast %92 : vector<16x1xf32> to vector<16x64xf32>
    %94 = arith.addf %90, %93 : vector<16x64xf32>
    %cst_45 = arith.constant 0.000000e+00 : f32
    %95 = vector.broadcast %cst_45 : f32 to vector<16x64xf32>
    %96 = arith.maximumf %94, %95 : vector<16x64xf32>
    %c0_46 = arith.constant 0 : index
    %c0_47 = arith.constant 0 : index
    %c0_48 = arith.constant 0 : index
    %c0_49 = arith.constant 0 : index
    %97 = vector.load %arg6[%c0_46, %c0_47, %c0_48, %c0_49] : memref<1x1x16x64xf32, #tpu.memory_space<vmem>>, vector<1x1x16x64xf32>
    %98 = vector.shape_cast %97 : vector<1x1x16x64xf32> to vector<16x64xf32>
    %99 = vector.shape_cast %96 : vector<16x64xf32> to vector<1x1x16x64xf32>
    tpu.vector_store %arg6[%c0_46, %c0_47, %c0_48, %c0_49], %99 {strides = array<i32>} : memref<1x1x16x64xf32, #tpu.memory_space<vmem>>, vector<1x1x16x64xf32>,
    return
  }
  func.func @transform_0(%arg0: i32, %arg1: i32) -> (i32, i32, i32, i32) {
    %c0_i32 = arith.constant 0 : i32
    %c0_i32_0 = arith.constant 0 : i32
    %c0_i32_1 = arith.constant 0 : i32
    return %arg0, %arg1, %c0_i32, %c0_i32_0 : i32, i32, i32, i32
  }
  func.func @transform_1(%arg0: i32, %arg1: i32) -> (i32, i32, i32, i32) {
    %c0_i32 = arith.constant 0 : i32
    %c0_i32_0 = arith.constant 0 : i32
    %c0_i32_1 = arith.constant 0 : i32
    %c0_i32_2 = arith.constant 0 : i32
    return %arg0, %c0_i32, %c0_i32_0, %c0_i32_1 : i32, i32, i32, i32
  }
  func.func @transform_2(%arg0: i32, %arg1: i32) -> (i32, i32, i32) {
    %c0_i32 = arith.constant 0 : i32
    %c0_i32_0 = arith.constant 0 : i32
    %c0_i32_1 = arith.constant 0 : i32
    return %arg0, %c0_i32, %c0_i32_0 : i32, i32, i32
  }
  func.func @transform_3(%arg0: i32, %arg1: i32) -> (i32, i32) {
    %c0_i32 = arith.constant 0 : i32
    %c0_i32_0 = arith.constant 0 : i32
    %c0_i32_1 = arith.constant 0 : i32
    return %c0_i32, %c0_i32_0 : i32, i32
  }
  func.func @transform_4(%arg0: i32, %arg1: i32) -> (i32, i32, i32, i32) {
    %c0_i32 = arith.constant 0 : i32
    %c0_i32_0 = arith.constant 0 : i32
    %c0_i32_1 = arith.constant 0 : i32
    return %arg0, %arg1, %c0_i32, %c0_i32_0 : i32, i32, i32, i32
  }
}

</mosaic_0001>

<llo_original>
// kernel: conv_bimla_forward.2
$region0: #{conv_bimla_forward.2}
  #allocation0 [shape = 'u32[]', space=smem, size = 0x4, offset = 0x4, fixed_abs, tag = 'smem constant byte address 0x4 - core index']
  #allocation1 [shape = 'u32[144,128]{1,0:T(1,128)}', space=vmem, size = 0x12000, scoped, tag = 'internal scratch']
  %s0 = inlined_call_operand.vmem [shape: bf16[2,64,32], index: 0, kind: input, shape index: {}]
  %s1 = inlined_call_operand.vmem [shape: bf16[2,64,32], index: 1, kind: input, shape index: {}]
  %s2 = inlined_call_operand.vmem [shape: bf16[2,64,32], index: 2, kind: input, shape index: {}]
  %s3 = inlined_call_operand.vmem [shape: bf16[2,64,32], index: 3, kind: input, shape index: {}]
  %s4 = inlined_call_operand.vmem [shape: bf16[4,16,32], index: 4, kind: input, shape index: {}]
  %s5 = inlined_call_operand.vmem [shape: f32[4,16,1], index: 5, kind: input, shape index: {}]
  %s6 = inlined_call_operand.vmem [shape: bf16[8,2,16,64], index: 6, kind: output, shape index: {}]
  %s7 = sld [smem:[#allocation0]]
  $region94: #{conv_bimla_forward.2} parent=0
    _
  %s9 = ssub.s32 1, %s7
  %s10 = scalar_select 0, %s9, %s7
  $region1: #{conv_bimla_forward.2} parent=0
    #allocation2 [shape = 'u8[65536]{0}', space=vmem, size = 0x10000, scoped, tag = 'output window, operand 0']
    loop: start=0, step=1, limit=4
    $region2: #{conv_bimla_forward.2} parent=1 // loop_pre_header
      _
    $region3: #{conv_bimla_forward.2} parent=1 // loop_header
      %s12 = sphi 0, %s16
      %p13 = scmp.ge.s32.totalorder %s12, 4
      %s19 = sphi 0, %s31
      %s20 = sphi 0, %s27
      %s21 = sphi 0, %s19
      %s22 = sphi 0, %s20
      %s23 = sphi 0, %s21
      %s24 = sphi 0, %s22
      %s36 = sphi 0, %s38
      %s39 = sphi 0, %s36
      %s40 = sphi 0, %s39
      %s56 = sphi 0, %s40
      %s64 = sphi 0, %s66
      %s67 = sphi 0, %s64
      %s68 = sphi 0, %s67
      %s84 = sphi 0, %s68
      %s92 = sphi 0, %s94
      %s95 = sphi 0, %s92
      %s96 = sphi 0, %s95
      %s112 = sphi 0, %s96
      %s120 = sphi 0, %s122
      %s123 = sphi 0, %s120
      %s124 = sphi 0, %s123
      %s140 = sphi 0, %s124
      %s144 = sphi 0, %s144
      %s146 = sphi 0, %s144
      %s147 = sphi 0, %s146
      %s161 = sphi 0, %s147
      %s165 = sphi 0, %s165
      %s167 = sphi 0, %s165
      %s168 = sphi 0, %s167
      %s182 = sphi 0, %s168
      %s190 = sphi 0, %s192
      %s193 = sphi 0, %s190
      %s194 = sphi 0, %s193
      %s210 = sphi 0, %s194
    $region4: #{conv_bimla_forward.2} parent=1 // loop_header_branch
      %15 = sbr.rel (%p13) target = $region8
    $region5: #{conv_bimla_forward.2} parent=1 // loop_body
      %s17 = ssub.s32 %s12, 1
      %s18 = ssub.s32 %s12, 2
      %s25 = sadd.s32 1, %s20
      %p26 = scmp.ge.s32.totalorder %s25, 1
      %s27 = scalar_select %p26, 0, %s25
      %s28 = sadd.s32 1, %s19
      %s29 = scalar_select %p26, %s28, %s19
      %p30 = scmp.ge.s32.totalorder %s29, 2
      %s31 = scalar_select %p30, 0, %s29
      %s32 = ssub.s32 %s19, %s31
      %s33 = ssub.s32 %s20, %s27
      %s34 = sor.u32 %s32, %s33
      %p35 = scmp.eq.s32.totalorder %s34, 0
      %s37 = sadd.s32 %s36, 1
      %s38 = scalar_select %p35, %s36, %s37
      %p41 = pneg %p35
      %p42 = scmp.eq.s32.totalorder %s12, 1
      %p43 = por %p41, %p42
      %p44 = scmp.ne.s32.totalorder %s36, %s39
      %p45 = scmp.eq.s32.totalorder %s12, 0
      %p46 = por %p44, %p45
      %p47 = scmp.ne.s32.totalorder %s36, %s39
      %p48 = scmp.eq.s32.totalorder %s17, 1
      %p49 = por %p47, %p48
      %p50 = scmp.ne.s32.totalorder %s39, %s40
      %p51 = scmp.eq.s32.totalorder %s17, 0
      %p52 = por %p50, %p51
      %p53 = scmp.ne.s32.totalorder %s39, %s40
      %p54 = scmp.eq.s32.totalorder %s18, 1
      %p55 = por %p53, %p54
      %p57 = scmp.ne.s32.totalorder %s40, %s56
      %p58 = scmp.eq.s32.totalorder %s18, 0
      %p59 = por %p57, %p58
      %s60 = ssub.s32 %s19, %s31
      %s61 = ssub.s32 %s20, %s27
      %s62 = sor.u32 %s60, %s61
      %p63 = scmp.eq.s32.totalorder %s62, 0
      %s65 = sadd.s32 %s64, 1
      %s66 = scalar_select %p63, %s64, %s65
      %p69 = pneg %p63
      %p70 = scmp.eq.s32.totalorder %s12, 1
      %p71 = por %p69, %p70
      %p72 = scmp.ne.s32.totalorder %s64, %s67
      %p73 = scmp.eq.s32.totalorder %s12, 0
      %p74 = por %p72, %p73
      %p75 = scmp.ne.s32.totalorder %s64, %s67
      %p76 = scmp.eq.s32.totalorder %s17, 1
      %p77 = por %p75, %p76
      %p78 = scmp.ne.s32.totalorder %s67, %s68
      %p79 = scmp.eq.s32.totalorder %s17, 0
      %p80 = por %p78, %p79
      %p81 = scmp.ne.s32.totalorder %s67, %s68
      %p82 = scmp.eq.s32.totalorder %s18, 1
      %p83 = por %p81, %p82
      %p85 = scmp.ne.s32.totalorder %s68, %s84
      %p86 = scmp.eq.s32.totalorder %s18, 0
      %p87 = por %p85, %p86
      %s88 = ssub.s32 %s19, %s31
      %s89 = ssub.s32 %s20, %s27
      %s90 = sor.u32 %s88, %s89
      %p91 = scmp.eq.s32.totalorder %s90, 0
      %s93 = sadd.s32 %s92, 1
      %s94 = scalar_select %p91, %s92, %s93
      %p97 = pneg %p91
      %p98 = scmp.eq.s32.totalorder %s12, 1
      %p99 = por %p97, %p98
      %p100 = scmp.ne.s32.totalorder %s92, %s95
      %p101 = scmp.eq.s32.totalorder %s12, 0
      %p102 = por %p100, %p101
      %p103 = scmp.ne.s32.totalorder %s92, %s95
      %p104 = scmp.eq.s32.totalorder %s17, 1
      %p105 = por %p103, %p104
      %p106 = scmp.ne.s32.totalorder %s95, %s96
      %p107 = scmp.eq.s32.totalorder %s17, 0
      %p108 = por %p106, %p107
      %p109 = scmp.ne.s32.totalorder %s95, %s96
      %p110 = scmp.eq.s32.totalorder %s18, 1
      %p111 = por %p109, %p110
      %p113 = scmp.ne.s32.totalorder %s96, %s112
      %p114 = scmp.eq.s32.totalorder %s18, 0
      %p115 = por %p113, %p114
      %s116 = ssub.s32 %s19, %s31
      %s117 = ssub.s32 %s20, %s27
      %s118 = sor.u32 %s116, %s117
      %p119 = scmp.eq.s32.totalorder %s118, 0
      %s121 = sadd.s32 %s120, 1
      %s122 = scalar_select %p119, %s120, %s121
      %p125 = pneg %p119
      %p126 = scmp.eq.s32.totalorder %s12, 1
      %p127 = por %p125, %p126
      %p128 = scmp.ne.s32.totalorder %s120, %s123
      %p129 = scmp.eq.s32.totalorder %s12, 0
      %p130 = por %p128, %p129
      %p131 = scmp.ne.s32.totalorder %s120, %s123
      %p132 = scmp.eq.s32.totalorder %s17, 1
      %p133 = por %p131, %p132
      %p134 = scmp.ne.s32.totalorder %s123, %s124
      %p135 = scmp.eq.s32.totalorder %s17, 0
      %p136 = por %p134, %p135
      %p137 = scmp.ne.s32.totalorder %s123, %s124
      %p138 = scmp.eq.s32.totalorder %s18, 1
      %p139 = por %p137, %p138
      %p141 = scmp.ne.s32.totalorder %s124, %s140
      %p142 = scmp.eq.s32.totalorder %s18, 0
      %p143 = por %p141, %p142
      %s145 = sadd.s32 %s144, 1
      %p148 = scmp.eq.s32.totalorder %s12, 1
      %p149 = scmp.ne.s32.totalorder %s144, %s146
      %p150 = scmp.eq.s32.totalorder %s12, 0
      %p151 = por %p149, %p150
      %p152 = scmp.ne.s32.totalorder %s144, %s146
      %p153 = scmp.eq.s32.totalorder %s17, 1
      %p154 = por %p152, %p153
      %p155 = scmp.ne.s32.totalorder %s146, %s147
      %p156 = scmp.eq.s32.totalorder %s17, 0
      %p157 = por %p155, %p156
      %p158 = scmp.ne.s32.totalorder %s146, %s147
      %p159 = scmp.eq.s32.totalorder %s18, 1
      %p160 = por %p158, %p159
      %p162 = scmp.ne.s32.totalorder %s147, %s161
      %p163 = scmp.eq.s32.totalorder %s18, 0
      %p164 = por %p162, %p163
      %s166 = sadd.s32 %s165, 1
      %p169 = scmp.eq.s32.totalorder %s12, 1
      %p170 = scmp.ne.s32.totalorder %s165, %s167
      %p171 = scmp.eq.s32.totalorder %s12, 0
      %p172 = por %p170, %p171
      %p173 = scmp.ne.s32.totalorder %s165, %s167
      %p174 = scmp.eq.s32.totalorder %s17, 1
      %p175 = por %p173, %p174
      %p176 = scmp.ne.s32.totalorder %s167, %s168
      %p177 = scmp.eq.s32.totalorder %s17, 0
      %p178 = por %p176, %p177
      %p179 = scmp.ne.s32.totalorder %s167, %s168
      %p180 = scmp.eq.s32.totalorder %s18, 1
      %p181 = por %p179, %p180
      %p183 = scmp.ne.s32.totalorder %s168, %s182
      %p184 = scmp.eq.s32.totalorder %s18, 0
      %p185 = por %p183, %p184
      %s186 = ssub.s32 %s19, %s31
      %s187 = ssub.s32 %s20, %s27
      %s188 = sor.u32 %s186, %s187
      %p189 = scmp.eq.s32.totalorder %s188, 0
      %s191 = sadd.s32 %s190, 1
      %s192 = scalar_select %p189, %s190, %s191
      %p195 = pneg %p189
      %p196 = scmp.eq.s32.totalorder %s12, 1
      %p197 = por %p195, %p196
      %p198 = scmp.ne.s32.totalorder %s190, %s193
      %p199 = scmp.eq.s32.totalorder %s12, 0
      %p200 = por %p198, %p199
      %p201 = scmp.ne.s32.totalorder %s190, %s193
      %p202 = scmp.eq.s32.totalorder %s17, 1
      %p203 = por %p201, %p202
      %p204 = scmp.ne.s32.totalorder %s193, %s194
      %p205 = scmp.eq.s32.totalorder %s17, 0
      %p206 = por %p204, %p205
      %p207 = scmp.ne.s32.totalorder %s193, %s194
      %p208 = scmp.eq.s32.totalorder %s18, 1
      %p209 = por %p207, %p208
      %p211 = scmp.ne.s32.totalorder %s194, %s210
      %p212 = scmp.eq.s32.totalorder %s18, 0
      %p213 = por %p211, %p212
      %p214 = scmp.le.s32.totalorder 1, %s12
      %p215 = scmp.lt.s32.totalorder %s12, 3
      %p216 = pnand %p214, %p215
      %p217 = pneg %p216
      // Predicated region
      $region9: #{conv_bimla_forward.2} parent=5 // pred_check
        _
      $region10: #{conv_bimla_forward.2} parent=5 // pred_check_branch
        %219 = sbr.rel (%p216) target = $region12
      $region11: #{conv_bimla_forward.2} parent=5 // pred_region
        %s220 = ssub.s32 %s12, 1
        // Predicated region
        $region13: #{conv_bimla_forward.2} parent=11 // pred_check
          %p221 = pneg %p157
        $region14: #{conv_bimla_forward.2} parent=11 // pred_check_branch
          %223 = sbr.rel (%p221) target = $region16
        $region15: #{conv_bimla_forward.2} parent=11 // pred_region
          _
        $region16: #{conv_bimla_forward.2} parent=11 // pred_fallthru
          _
        // Predicated region
        $region17: #{conv_bimla_forward.2} parent=11 // pred_check
          %p224 = pneg %p178
        $region18: #{conv_bimla_forward.2} parent=11 // pred_check_branch
          %226 = sbr.rel (%p224) target = $region20
        $region19: #{conv_bimla_forward.2} parent=11 // pred_region
          _
        $region20: #{conv_bimla_forward.2} parent=11 // pred_fallthru
          _
      $region12: #{conv_bimla_forward.2} parent=5 // pred_fallthru
        _
      %p227 = scmp.lt.s32.totalorder %s12, 2
      // Predicated region
      $region21: #{conv_bimla_forward.2} parent=5 // pred_check
        %p228 = pneg %p227
      $region22: #{conv_bimla_forward.2} parent=5 // pred_check_branch
        %230 = sbr.rel (%p228) target = $region24
      $region23: #{conv_bimla_forward.2} parent=5 // pred_region
        // Predicated region
        $region25: #{conv_bimla_forward.2} parent=23 // pred_check
          %p231 = pneg %p46
        $region26: #{conv_bimla_forward.2} parent=23 // pred_check_branch
          %233 = sbr.rel (%p231) target = $region28
        $region27: #{conv_bimla_forward.2} parent=23 // pred_region
          %s234 = smul.u32 8, %s20
          %p235 = scmp.lt.s32.totalorder %s19, 1
          %s236 = scalar_select %p235, %s19, 1
          %p237 = scmp.lt.s32.totalorder %s234, 7
          %s238 = scalar_select %p237, %s234, 7
          %s239 = smul.addr %s236, 8
          %s240 = sadd.s32 %s238, %s239
          %s241 = smul.addr %s240, 4
          %s242 = scalar_lea.vmem %s0, %s241
          %s243 = smul.u32 8, %s20
        $region28: #{conv_bimla_forward.2} parent=23 // pred_fallthru
          _
        // Predicated region
        $region29: #{conv_bimla_forward.2} parent=23 // pred_check
          %p244 = pneg %p74
        $region30: #{conv_bimla_forward.2} parent=23 // pred_check_branch
          %246 = sbr.rel (%p244) target = $region32
        $region31: #{conv_bimla_forward.2} parent=23 // pred_region
          %s247 = smul.u32 8, %s20
          %p248 = scmp.lt.s32.totalorder %s19, 1
          %s249 = scalar_select %p248, %s19, 1
          %p250 = scmp.lt.s32.totalorder %s247, 7
          %s251 = scalar_select %p250, %s247, 7
          %s252 = smul.addr %s249, 8
          %s253 = sadd.s32 %s251, %s252
          %s254 = smul.addr %s253, 4
          %s255 = scalar_lea.vmem %s1, %s254
          %s256 = smul.u32 8, %s20
        $region32: #{conv_bimla_forward.2} parent=23 // pred_fallthru
          _
        // Predicated region
        $region33: #{conv_bimla_forward.2} parent=23 // pred_check
          %p257 = pneg %p102
        $region34: #{conv_bimla_forward.2} parent=23 // pred_check_branch
          %259 = sbr.rel (%p257) target = $region36
        $region35: #{conv_bimla_forward.2} parent=23 // pred_region
          %s260 = smul.u32 8, %s20
          %p261 = scmp.lt.s32.totalorder %s19, 1
          %s262 = scalar_select %p261, %s19, 1
          %p263 = scmp.lt.s32.totalorder %s260, 7
          %s264 = scalar_select %p263, %s260, 7
          %s265 = smul.addr %s262, 8
          %s266 = sadd.s32 %s264, %s265
          %s267 = smul.addr %s266, 4
          %s268 = scalar_lea.vmem %s2, %s267
          %s269 = smul.u32 8, %s20
        $region36: #{conv_bimla_forward.2} parent=23 // pred_fallthru
          _
        // Predicated region
        $region37: #{conv_bimla_forward.2} parent=23 // pred_check
          %p270 = pneg %p130
        $region38: #{conv_bimla_forward.2} parent=23 // pred_check_branch
          %272 = sbr.rel (%p270) target = $region40
        $region39: #{conv_bimla_forward.2} parent=23 // pred_region
          %s273 = smul.u32 8, %s20
          %p274 = scmp.lt.s32.totalorder %s19, 1
          %s275 = scalar_select %p274, %s19, 1
          %p276 = scmp.lt.s32.totalorder %s273, 7
          %s277 = scalar_select %p276, %s273, 7
          %s278 = smul.addr %s275, 8
          %s279 = sadd.s32 %s277, %s278
          %s280 = smul.addr %s279, 4
          %s281 = scalar_lea.vmem %s3, %s280
          %s282 = smul.u32 8, %s20
        $region40: #{conv_bimla_forward.2} parent=23 // pred_fallthru
          _
      $region24: #{conv_bimla_forward.2} parent=5 // pred_fallthru
        _
      %p283 = scmp.le.s32.totalorder 1, %s12
      %p284 = scmp.lt.s32.totalorder %s12, 3
      %p285 = pnand %p283, %p284
      %p286 = pneg %p285
      // Predicated region
      $region41: #{conv_bimla_forward.2} parent=5 // pred_check
        _
      $region42: #{conv_bimla_forward.2} parent=5 // pred_check_branch
        %288 = sbr.rel (%p285) target = $region44
      $region43: #{conv_bimla_forward.2} parent=5 // pred_region
        %s289 = ssub.s32 %s12, 1
        %s290 = smul.u32 8, %s22
        %p291 = scmp.lt.s32.totalorder %s21, 1
        %s292 = scalar_select %p291, %s21, 1
        %p293 = scmp.lt.s32.totalorder %s290, 7
        %s294 = scalar_select %p293, %s290, 7
        %s295 = smul.addr %s292, 8
        %s296 = sadd.s32 %s294, %s295
        %s297 = smul.addr %s296, 4
        %s298 = scalar_lea.vmem %s0, %s297
        %p299 = pneg %p52
        %p300 = pneg %p49
        %s301 = smul.u32 8, %s22
        %p302 = scmp.lt.s32.totalorder %s21, 1
        %s303 = scalar_select %p302, %s21, 1
        %p304 = scmp.lt.s32.totalorder %s301, 7
        %s305 = scalar_select %p304, %s301, 7
        %s306 = smul.addr %s303, 8
        %s307 = sadd.s32 %s305, %s306
        %s308 = smul.addr %s307, 4
        %s309 = scalar_lea.vmem %s1, %s308
        %p310 = pneg %p80
        %p311 = pneg %p77
        %s312 = smul.u32 8, %s22
        %p313 = scmp.lt.s32.totalorder %s21, 1
        %s314 = scalar_select %p313, %s21, 1
        %p315 = scmp.lt.s32.totalorder %s312, 7
        %s316 = scalar_select %p315, %s312, 7
        %s317 = smul.addr %s314, 8
        %s318 = sadd.s32 %s316, %s317
        %s319 = smul.addr %s318, 4
        %s320 = scalar_lea.vmem %s2, %s319
        %p321 = pneg %p108
        %p322 = pneg %p105
        %s323 = smul.u32 8, %s22
        %p324 = scmp.lt.s32.totalorder %s21, 1
        %s325 = scalar_select %p324, %s21, 1
        %p326 = scmp.lt.s32.totalorder %s323, 7
        %s327 = scalar_select %p326, %s323, 7
        %s328 = smul.addr %s325, 8
        %s329 = sadd.s32 %s327, %s328
        %s330 = smul.addr %s329, 4
        %s331 = scalar_lea.vmem %s3, %s330
        %p332 = pneg %p136
        %p333 = pneg %p133
        %p334 = pneg %p157
        %p335 = pneg %p154
        %p336 = pneg %p178
        %p337 = pneg %p175
        %p338 = pneg %p206
        %p339 = pneg %p203
        %s340 = sand.u32 %s193, 1
        %s341 = sand.u32 %s193, 1
        %s342 = smul.addr %s341, 64
        %s343 = scalar_lea.vmem [#allocation2], %s342
        %s344 = smul.u32 8, %s22
        %p345 = scmp.lt.s32.totalorder %s21, 1
        %s346 = scalar_select %p345, %s21, 1
        %p347 = scmp.lt.s32.totalorder %s344, 7
        %s348 = scalar_select %p347, %s344, 7
        %s349 = smul.addr %s346, 8
        %s350 = sadd.s32 %s348, %s349
        %s351 = smul.addr %s350, 4
        %s352 = scalar_lea.vmem %s0, %s351
        %s353 = smul.u32 8, %s22
        %s354 = smul.u32 8, %s22
        %p355 = scmp.lt.s32.totalorder %s21, 1
        %s356 = scalar_select %p355, %s21, 1
        %p357 = scmp.lt.s32.totalorder %s354, 7
        %s358 = scalar_select %p357, %s354, 7
        %s359 = smul.addr %s356, 8
        %s360 = sadd.s32 %s358, %s359
        %s361 = smul.addr %s360, 4
        %s362 = scalar_lea.vmem %s1, %s361
        %s363 = smul.u32 8, %s22
        %s364 = smul.u32 8, %s22
        %p365 = scmp.lt.s32.totalorder %s21, 1
        %s366 = scalar_select %p365, %s21, 1
        %p367 = scmp.lt.s32.totalorder %s364, 7
        %s368 = scalar_select %p367, %s364, 7
        %s369 = smul.addr %s366, 8
        %s370 = sadd.s32 %s368, %s369
        %s371 = smul.addr %s370, 4
        %s372 = scalar_lea.vmem %s2, %s371
        %s373 = smul.u32 8, %s22
        %s374 = smul.u32 8, %s22
        %p375 = scmp.lt.s32.totalorder %s21, 1
        %s376 = scalar_select %p375, %s21, 1
        %p377 = scmp.lt.s32.totalorder %s374, 7
        %s378 = scalar_select %p377, %s374, 7
        %s379 = smul.addr %s376, 8
        %s380 = sadd.s32 %s378, %s379
        %s381 = smul.addr %s380, 4
        %s382 = scalar_lea.vmem %s3, %s381
        %s383 = smul.u32 8, %s22
        %v385 = vld [vmem:[%s352] sm:$0xf]
        %v386 = vld [vmem:[%s352 + $0x4] sm:$0xf]
        %v387 = vld [vmem:[%s352 + $0x8] sm:$0xf]
        %v388 = vld [vmem:[%s352 + $0xc] sm:$0xf]
        %v389 = vld [vmem:[%s352 + $0x10] sm:$0xf]
        %v390 = vld [vmem:[%s352 + $0x14] sm:$0xf]
        %v391 = vld [vmem:[%s352 + $0x18] sm:$0xf]
        %v392 = vld [vmem:[%s352 + $0x1c] sm:$0xf]
        %v393 = vld [vmem:[%s4] sm:$0xf]
        %v394 = vld [vmem:[%s4 + $0x4] sm:$0xf]
        %v395 = vld [vmem:[%s5] sm:$0xff]
        %v396 = vld [vmem:[%s5 + $0x8] sm:$0xff]
        %398 = vset.pattern.permute.xlu0 0
        %399 = vperm.xlu0 %398, %v395
        %v400 = vpop.permute.xlu0 %399
        %403 = vset.pattern.permute.xlu0 0
        %404 = vperm.xlu0 %403, %v396
        %v405 = vpop.permute.xlu0 %404
        %v409 = vunpack.c.l.b16 %v393
        %v410 = vunpack.c.l.b16 %v394
        %v411 = vpack.c.b16 %v410, %v409
        %v420 = vunpack.c.l.b16 %v385
        %v421 = vunpack.c.l.b16 %v386
        %v422 = vunpack.c.l.b16 %v387
        %v423 = vunpack.c.l.b16 %v388
        %v424 = vunpack.c.l.b16 %v389
        %v425 = vunpack.c.l.b16 %v390
        %v426 = vunpack.c.l.b16 %v391
        %v427 = vunpack.c.l.b16 %v392
        %v428 = vpack.c.b16 %v421, %v420
        %v429 = vpack.c.b16 %v423, %v422
        %v430 = vpack.c.b16 %v425, %v424
        %v431 = vpack.c.b16 %v427, %v426
        %vm432 = vcmask 261120
        %v434 = vsel %vm432, %v411, 0
        %v437 = vsel %vm432, %v428, 0
        %v440 = vsel %vm432, %v429, 0
        %v443 = vsel %vm432, %v430, 0
        %v446 = vsel %vm432, %v431, 0
        %448 = vmatprep.subr.bf16.mxu0 0
        %449 = vmatpush1.bf16.xpose.msra.mxu0 %v437
        %450 = vmatprep.subr.bf16.mxu0 0
        %451 = vmatpush1.bf16.xpose.msra.mxu0 %v440
        %452 = vmatprep.subr.bf16.mxu0 0
        %453 = vmatpush1.bf16.xpose.msra.mxu0 %v443
        %454 = vmatprep.subr.bf16.mxu0 0
        %455 = vmatpush1.bf16.xpose.msra.mxu0 %v446
        %456 = vmatprep.subr.bf16.mxu0 0
        %457 = vmatpush1.bf16.xpose.msra.mxu0 0
        %458 = vmatprep.subr.bf16.mxu0 0
        %459 = vmatpush1.bf16.xpose.msra.mxu0 0
        %460 = vmatprep.subr.bf16.mxu0 0
        %461 = vmatpush1.bf16.xpose.msra.mxu0 0
        %462 = vmatprep.subr.bf16.mxu0 0
        %463 = vmatpush1.bf16.xpose.msra.mxu0 0
        %464 = vmatprep.subr.bf16.mxu0 0
        %465 = vmatpush1.bf16.xpose.msra.mxu0 0
        %466 = vmatprep.subr.bf16.mxu0 0
        %467 = vmatpush1.bf16.xpose.msra.mxu0 0
        %468 = vmatprep.subr.bf16.mxu0 0
        %469 = vmatpush1.bf16.xpose.msra.mxu0 0
        %470 = vmatprep.subr.bf16.mxu0 0
        %471 = vmatpush1.bf16.xpose.msra.mxu0 0
        %472 = vmatprep.subr.bf16.mxu0 0
        %473 = vmatpush1.bf16.xpose.msra.mxu0 0
        %474 = vmatprep.subr.bf16.mxu0 0
        %475 = vmatpush1.bf16.xpose.msra.mxu0 0
        %476 = vmatprep.subr.bf16.mxu0 0
        %477 = vmatpush1.bf16.xpose.msra.mxu0 0
        %478 = vmatprep.subr.bf16.mxu0 0
        %479 = vmatpush1.bf16.xpose.msra.mxu0 0
        %480 = vmatprep.mubr.bf16.mxu0 0
        %481 = vmatmul.mubr.bf16.gmra.mrb[0].mxu0 %v434
        %v482 = vpop.f32.mrb[0].mxu0
        %v483 = vadd.f32 %v400, %v482
        %v484 = vpop.f32.mrb[0].mxu0
        %v485 = vpop.f32.mrb[0].mxu0
        %v486 = vadd.f32 %v405, %v485
        %v487 = vpop.f32.mrb[0].mxu0
        %488 = vdwg.mxu0
        %v489 = vmax.f32 %v483, 0.0
        %v490 = vmax.f32 %v486, 0.0
        %v491 = vld [vmem:[%s362] sm:$0xf]
        %v492 = vld [vmem:[%s362 + $0x4] sm:$0xf]
        %v493 = vld [vmem:[%s362 + $0x8] sm:$0xf]
        %v494 = vld [vmem:[%s362 + $0xc] sm:$0xf]
        %v495 = vld [vmem:[%s362 + $0x10] sm:$0xf]
        %v496 = vld [vmem:[%s362 + $0x14] sm:$0xf]
        %v497 = vld [vmem:[%s362 + $0x18] sm:$0xf]
        %v498 = vld [vmem:[%s362 + $0x1c] sm:$0xf]
        %s499 = scalar_lea.vmem %s4, 8
        %v500 = vld [vmem:[%s499] sm:$0xf]
        %v501 = vld [vmem:[%s499 + $0x4] sm:$0xf]
        %s502 = scalar_lea.vmem %s5, 16
        %v503 = vld [vmem:[%s502] sm:$0xff]
        %v504 = vld [vmem:[%s502 + $0x8] sm:$0xff]
        %506 = vset.pattern.permute.xlu0 0
        %507 = vperm.xlu0 %506, %v503
        %v508 = vpop.permute.xlu0 %507
        %511 = vset.pattern.permute.xlu0 0
        %512 = vperm.xlu0 %511, %v504
        %v513 = vpop.permute.xlu0 %512
        %v517 = vunpack.c.l.b16 %v500
        %v518 = vunpack.c.l.b16 %v501
        %v519 = vpack.c.b16 %v518, %v517
        %v528 = vunpack.c.l.b16 %v491
        %v529 = vunpack.c.l.b16 %v492
        %v530 = vunpack.c.l.b16 %v493
        %v531 = vunpack.c.l.b16 %v494
        %v532 = vunpack.c.l.b16 %v495
        %v533 = vunpack.c.l.b16 %v496
        %v534 = vunpack.c.l.b16 %v497
        %v535 = vunpack.c.l.b16 %v498
        %v536 = vpack.c.b16 %v529, %v528
        %v537 = vpack.c.b16 %v531, %v530
        %v538 = vpack.c.b16 %v533, %v532
        %v539 = vpack.c.b16 %v535, %v534
        %v541 = vsel %vm432, %v519, 0
        %v544 = vsel %vm432, %v536, 0
        %v547 = vsel %vm432, %v537, 0
        %v550 = vsel %vm432, %v538, 0
        %v553 = vsel %vm432, %v539, 0
        %555 = vmatprep.subr.bf16.mxu0 0
        %556 = vmatpush1.bf16.xpose.msra.mxu0 %v544
        %557 = vmatprep.subr.bf16.mxu0 0
        %558 = vmatpush1.bf16.xpose.msra.mxu0 %v547
        %559 = vmatprep.subr.bf16.mxu0 0
        %560 = vmatpush1.bf16.xpose.msra.mxu0 %v550
        %561 = vmatprep.subr.bf16.mxu0 0
        %562 = vmatpush1.bf16.xpose.msra.mxu0 %v553
        %563 = vmatprep.subr.bf16.mxu0 0
        %564 = vmatpush1.bf16.xpose.msra.mxu0 0
        %565 = vmatprep.subr.bf16.mxu0 0
        %566 = vmatpush1.bf16.xpose.msra.mxu0 0
        %567 = vmatprep.subr.bf16.mxu0 0
        %568 = vmatpush1.bf16.xpose.msra.mxu0 0
        %569 = vmatprep.subr.bf16.mxu0 0
        %570 = vmatpush1.bf16.xpose.msra.mxu0 0
        %571 = vmatprep.subr.bf16.mxu0 0
        %572 = vmatpush1.bf16.xpose.msra.mxu0 0
        %573 = vmatprep.subr.bf16.mxu0 0
        %574 = vmatpush1.bf16.xpose.msra.mxu0 0
        %575 = vmatprep.subr.bf16.mxu0 0
        %576 = vmatpush1.bf16.xpose.msra.mxu0 0
        %577 = vmatprep.subr.bf16.mxu0 0
        %578 = vmatpush1.bf16.xpose.msra.mxu0 0
        %579 = vmatprep.subr.bf16.mxu0 0
        %580 = vmatpush1.bf16.xpose.msra.mxu0 0
        %581 = vmatprep.subr.bf16.mxu0 0
        %582 = vmatpush1.bf16.xpose.msra.mxu0 0
        %583 = vmatprep.subr.bf16.mxu0 0
        %584 = vmatpush1.bf16.xpose.msra.mxu0 0
        %585 = vmatprep.subr.bf16.mxu0 0
        %586 = vmatpush1.bf16.xpose.msra.mxu0 0
        %587 = vmatprep.mubr.bf16.mxu0 0
        %588 = vmatmul.mubr.bf16.gmra.mrb[0].mxu0 %v541
        %v589 = vpop.f32.mrb[0].mxu0
        %v590 = vadd.f32 %v508, %v589
        %v591 = vpop.f32.mrb[0].mxu0
        %v592 = vpop.f32.mrb[0].mxu0
        %v593 = vadd.f32 %v513, %v592
        %v594 = vpop.f32.mrb[0].mxu0
        %595 = vdwg.mxu0
        %v596 = vmax.f32 %v590, 0.0
        %v597 = vmax.f32 %v593, 0.0
        %v598 = vld [vmem:[%s372] sm:$0xf]
        %v599 = vld [vmem:[%s372 + $0x4] sm:$0xf]
        %v600 = vld [vmem:[%s372 + $0x8] sm:$0xf]
        %v601 = vld [vmem:[%s372 + $0xc] sm:$0xf]
        %v602 = vld [vmem:[%s372 + $0x10] sm:$0xf]
        %v603 = vld [vmem:[%s372 + $0x14] sm:$0xf]
        %v604 = vld [vmem:[%s372 + $0x18] sm:$0xf]
        %v605 = vld [vmem:[%s372 + $0x1c] sm:$0xf]
        %s606 = scalar_lea.vmem %s4, 16
        %v607 = vld [vmem:[%s606] sm:$0xf]
        %v608 = vld [vmem:[%s606 + $0x4] sm:$0xf]
        %s609 = scalar_lea.vmem %s5, 32
        %v610 = vld [vmem:[%s609] sm:$0xff]
        %v611 = vld [vmem:[%s609 + $0x8] sm:$0xff]
        %613 = vset.pattern.permute.xlu0 0
        %614 = vperm.xlu0 %613, %v610
        %v615 = vpop.permute.xlu0 %614
        %618 = vset.pattern.permute.xlu0 0
        %619 = vperm.xlu0 %618, %v611
        %v620 = vpop.permute.xlu0 %619
        %v624 = vunpack.c.l.b16 %v607
        %v625 = vunpack.c.l.b16 %v608
        %v626 = vpack.c.b16 %v625, %v624
        %v635 = vunpack.c.l.b16 %v598
        %v636 = vunpack.c.l.b16 %v599
        %v637 = vunpack.c.l.b16 %v600
        %v638 = vunpack.c.l.b16 %v601
        %v639 = vunpack.c.l.b16 %v602
        %v640 = vunpack.c.l.b16 %v603
        %v641 = vunpack.c.l.b16 %v604
        %v642 = vunpack.c.l.b16 %v605
        %v643 = vpack.c.b16 %v636, %v635
        %v644 = vpack.c.b16 %v638, %v637
        %v645 = vpack.c.b16 %v640, %v639
        %v646 = vpack.c.b16 %v642, %v641
        %v648 = vsel %vm432, %v626, 0
        %v651 = vsel %vm432, %v643, 0
        %v654 = vsel %vm432, %v644, 0
        %v657 = vsel %vm432, %v645, 0
        %v660 = vsel %vm432, %v646, 0
        %662 = vmatprep.subr.bf16.mxu0 0
        %663 = vmatpush1.bf16.xpose.msra.mxu0 %v651
        %664 = vmatprep.subr.bf16.mxu0 0
        %665 = vmatpush1.bf16.xpose.msra.mxu0 %v654
        %666 = vmatprep.subr.bf16.mxu0 0
        %667 = vmatpush1.bf16.xpose.msra.mxu0 %v657
        %668 = vmatprep.subr.bf16.mxu0 0
        %669 = vmatpush1.bf16.xpose.msra.mxu0 %v660
        %670 = vmatprep.subr.bf16.mxu0 0
        %671 = vmatpush1.bf16.xpose.msra.mxu0 0
        %672 = vmatprep.subr.bf16.mxu0 0
        %673 = vmatpush1.bf16.xpose.msra.mxu0 0
        %674 = vmatprep.subr.bf16.mxu0 0
        %675 = vmatpush1.bf16.xpose.msra.mxu0 0
        %676 = vmatprep.subr.bf16.mxu0 0
        %677 = vmatpush1.bf16.xpose.msra.mxu0 0
        %678 = vmatprep.subr.bf16.mxu0 0
        %679 = vmatpush1.bf16.xpose.msra.mxu0 0
        %680 = vmatprep.subr.bf16.mxu0 0
        %681 = vmatpush1.bf16.xpose.msra.mxu0 0
        %682 = vmatprep.subr.bf16.mxu0 0
        %683 = vmatpush1.bf16.xpose.msra.mxu0 0
        %684 = vmatprep.subr.bf16.mxu0 0
        %685 = vmatpush1.bf16.xpose.msra.mxu0 0
        %686 = vmatprep.subr.bf16.mxu0 0
        %687 = vmatpush1.bf16.xpose.msra.mxu0 0
        %688 = vmatprep.subr.bf16.mxu0 0
        %689 = vmatpush1.bf16.xpose.msra.mxu0 0
        %690 = vmatprep.subr.bf16.mxu0 0
        %691 = vmatpush1.bf16.xpose.msra.mxu0 0
        %692 = vmatprep.subr.bf16.mxu0 0
        %693 = vmatpush1.bf16.xpose.msra.mxu0 0
        %694 = vmatprep.mubr.bf16.mxu0 0
        %695 = vmatmul.mubr.bf16.gmra.mrb[0].mxu0 %v648
        %v696 = vpop.f32.mrb[0].mxu0
        %v697 = vadd.f32 %v615, %v696
        %v698 = vpop.f32.mrb[0].mxu0
        %v699 = vpop.f32.mrb[0].mxu0
        %v700 = vadd.f32 %v620, %v699
        %v701 = vpop.f32.mrb[0].mxu0
        %702 = vdwg.mxu0
        %v703 = vmax.f32 %v697, 0.0
        %v704 = vmax.f32 %v700, 0.0
        %v705 = vld [vmem:[%s382] sm:$0xf]
        %v706 = vld [vmem:[%s382 + $0x4] sm:$0xf]
        %v707 = vld [vmem:[%s382 + $0x8] sm:$0xf]
        %v708 = vld [vmem:[%s382 + $0xc] sm:$0xf]
        %v709 = vld [vmem:[%s382 + $0x10] sm:$0xf]
        %v710 = vld [vmem:[%s382 + $0x14] sm:$0xf]
        %v711 = vld [vmem:[%s382 + $0x18] sm:$0xf]
        %v712 = vld [vmem:[%s382 + $0x1c] sm:$0xf]
        %s713 = scalar_lea.vmem %s4, 24
        %v714 = vld [vmem:[%s713] sm:$0xf]
        %v715 = vld [vmem:[%s713 + $0x4] sm:$0xf]
        %s716 = scalar_lea.vmem %s5, 48
        %v717 = vld [vmem:[%s716] sm:$0xff]
        %v718 = vld [vmem:[%s716 + $0x8] sm:$0xff]
        %720 = vset.pattern.permute.xlu0 0
        %721 = vperm.xlu0 %720, %v717
        %v722 = vpop.permute.xlu0 %721
        %725 = vset.pattern.permute.xlu0 0
        %726 = vperm.xlu0 %725, %v718
        %v727 = vpop.permute.xlu0 %726
        %v731 = vunpack.c.l.b16 %v714
        %v732 = vunpack.c.l.b16 %v715
        %v733 = vpack.c.b16 %v732, %v731
        %v742 = vunpack.c.l.b16 %v705
        %v743 = vunpack.c.l.b16 %v706
        %v744 = vunpack.c.l.b16 %v707
        %v745 = vunpack.c.l.b16 %v708
        %v746 = vunpack.c.l.b16 %v709
        %v747 = vunpack.c.l.b16 %v710
        %v748 = vunpack.c.l.b16 %v711
        %v749 = vunpack.c.l.b16 %v712
        %v750 = vpack.c.b16 %v743, %v742
        %v751 = vpack.c.b16 %v745, %v744
        %v752 = vpack.c.b16 %v747, %v746
        %v753 = vpack.c.b16 %v749, %v748
        %v755 = vsel %vm432, %v733, 0
        %v758 = vsel %vm432, %v750, 0
        %v761 = vsel %vm432, %v751, 0
        %v764 = vsel %vm432, %v752, 0
        %v767 = vsel %vm432, %v753, 0
        %769 = vmatprep.subr.bf16.mxu0 0
        %770 = vmatpush1.bf16.xpose.msra.mxu0 %v758
        %771 = vmatprep.subr.bf16.mxu0 0
        %772 = vmatpush1.bf16.xpose.msra.mxu0 %v761
        %773 = vmatprep.subr.bf16.mxu0 0
        %774 = vmatpush1.bf16.xpose.msra.mxu0 %v764
        %775 = vmatprep.subr.bf16.mxu0 0
        %776 = vmatpush1.bf16.xpose.msra.mxu0 %v767
        %777 = vmatprep.subr.bf16.mxu0 0
        %778 = vmatpush1.bf16.xpose.msra.mxu0 0
        %779 = vmatprep.subr.bf16.mxu0 0
        %780 = vmatpush1.bf16.xpose.msra.mxu0 0
        %781 = vmatprep.subr.bf16.mxu0 0
        %782 = vmatpush1.bf16.xpose.msra.mxu0 0
        %783 = vmatprep.subr.bf16.mxu0 0
        %784 = vmatpush1.bf16.xpose.msra.mxu0 0
        %785 = vmatprep.subr.bf16.mxu0 0
        %786 = vmatpush1.bf16.xpose.msra.mxu0 0
        %787 = vmatprep.subr.bf16.mxu0 0
        %788 = vmatpush1.bf16.xpose.msra.mxu0 0
        %789 = vmatprep.subr.bf16.mxu0 0
        %790 = vmatpush1.bf16.xpose.msra.mxu0 0
        %791 = vmatprep.subr.bf16.mxu0 0
        %792 = vmatpush1.bf16.xpose.msra.mxu0 0
        %793 = vmatprep.subr.bf16.mxu0 0
        %794 = vmatpush1.bf16.xpose.msra.mxu0 0
        %795 = vmatprep.subr.bf16.mxu0 0
        %796 = vmatpush1.bf16.xpose.msra.mxu0 0
        %797 = vmatprep.subr.bf16.mxu0 0
        %798 = vmatpush1.bf16.xpose.msra.mxu0 0
        %799 = vmatprep.subr.bf16.mxu0 0
        %800 = vmatpush1.bf16.xpose.msra.mxu0 0
        %801 = vmatprep.mubr.bf16.mxu0 0
        %802 = vmatmul.mubr.bf16.gmra.mrb[0].mxu0 %v755
        %v803 = vpop.f32.mrb[0].mxu0
        %v804 = vadd.f32 %v722, %v803
        %v805 = vpop.f32.mrb[0].mxu0
        %v806 = vpop.f32.mrb[0].mxu0
        %v807 = vadd.f32 %v727, %v806
        %v808 = vpop.f32.mrb[0].mxu0
        %809 = vdwg.mxu0
        %v810 = vmax.f32 %v804, 0.0
        %v811 = vmax.f32 %v807, 0.0
        %v812 = vadd.f32 %v810, %v703
        %v813 = vadd.f32 %v811, %v704
        %v814 = vadd.f32 %v812, %v596
        %v815 = vadd.f32 %v813, %v597
        %v816 = vadd.f32 %v814, %v489
        %v817 = vadd.f32 %v815, %v490
        %v818 = vadd.f32 %v489, %v596
        %v819 = vadd.f32 %v490, %v597
        %v820 = vadd.f32 %v818, %v703
        %v821 = vadd.f32 %v819, %v704
        %v822 = vadd.f32 %v820, %v810
        %v823 = vadd.f32 %v821, %v811
        %v824 = vpack.c.bf16 %v490, %v489
        %v826 = vunpack.c.l.b16 %v824
        %v827 = vunpack.c.h.b16 %v824
        %v828 = vpack.c.b16 %v826, %v826
        %v829 = vpack.c.b16 %v827, %v827
        %vm832 = vcmask 519168
        %833 = vst.msk [vmem:[%s343] sm:$0xf] %vm832, %v828
        %834 = vst.msk [vmem:[%s343 + $0x4] sm:$0xf] %vm832, %v829
        %v835 = vpack.c.bf16 %v819, %v818
        %v837 = vunpack.c.l.b16 %v835
        %v838 = vunpack.c.h.b16 %v835
        %v839 = vpack.c.b16 %v837, %v837
        %v840 = vpack.c.b16 %v838, %v838
        %s843 = scalar_lea.vmem %s343, 8 [#allocation2]
        %844 = vst.msk [vmem:[%s843] sm:$0xf] %vm832, %v839
        %845 = vst.msk [vmem:[%s843 + $0x4] sm:$0xf] %vm832, %v840
        %v846 = vpack.c.bf16 %v821, %v820
        %v848 = vunpack.c.l.b16 %v846
        %v849 = vunpack.c.h.b16 %v846
        %v850 = vpack.c.b16 %v848, %v848
        %v851 = vpack.c.b16 %v849, %v849
        %s854 = scalar_lea.vmem %s343, 16 [#allocation2]
        %855 = vst.msk [vmem:[%s854] sm:$0xf] %vm832, %v850
        %856 = vst.msk [vmem:[%s854 + $0x4] sm:$0xf] %vm832, %v851
        %v857 = vpack.c.bf16 %v823, %v822
        %v859 = vunpack.c.l.b16 %v857
        %v860 = vunpack.c.h.b16 %v857
        %v861 = vpack.c.b16 %v859, %v859
        %v862 = vpack.c.b16 %v860, %v860
        %s865 = scalar_lea.vmem %s343, 24 [#allocation2]
        %866 = vst.msk [vmem:[%s865] sm:$0xf] %vm832, %v861
        %867 = vst.msk [vmem:[%s865 + $0x4] sm:$0xf] %vm832, %v862
        %v868 = vpack.c.bf16 %v817, %v816
        %v870 = vunpack.c.l.b16 %v868
        %v871 = vunpack.c.h.b16 %v868
        %v872 = vpack.c.b16 %v870, %v870
        %v873 = vpack.c.b16 %v871, %v871
        %s876 = scalar_lea.vmem %s343, 32 [#allocation2]
        %877 = vst.msk [vmem:[%s876] sm:$0xf] %vm832, %v872
        %878 = vst.msk [vmem:[%s876 + $0x4] sm:$0xf] %vm832, %v873
        %v879 = vpack.c.bf16 %v815, %v814
        %v881 = vunpack.c.l.b16 %v879
        %v882 = vunpack.c.h.b16 %v879
        %v883 = vpack.c.b16 %v881, %v881
        %v884 = vpack.c.b16 %v882, %v882
        %s887 = scalar_lea.vmem %s343, 40 [#allocation2]
        %888 = vst.msk [vmem:[%s887] sm:$0xf] %vm832, %v883
        %889 = vst.msk [vmem:[%s887 + $0x4] sm:$0xf] %vm832, %v884
        %v890 = vpack.c.bf16 %v813, %v812
        %v892 = vunpack.c.l.b16 %v890
        %v893 = vunpack.c.h.b16 %v890
        %v894 = vpack.c.b16 %v892, %v892
        %v895 = vpack.c.b16 %v893, %v893
        %s898 = scalar_lea.vmem %s343, 48 [#allocation2]
        %899 = vst.msk [vmem:[%s898] sm:$0xf] %vm832, %v894
        %900 = vst.msk [vmem:[%s898 + $0x4] sm:$0xf] %vm832, %v895
        %v901 = vpack.c.bf16 %v811, %v810
        %v903 = vunpack.c.l.b16 %v901
        %v904 = vunpack.c.h.b16 %v901
        %v905 = vpack.c.b16 %v903, %v903
        %v906 = vpack.c.b16 %v904, %v904
        %s909 = scalar_lea.vmem %s343, 56 [#allocation2]
        %910 = vst.msk [vmem:[%s909] sm:$0xf] %vm832, %v905
        %911 = vst.msk [vmem:[%s909 + $0x4] sm:$0xf] %vm832, %v906
        %s912 = sand.u32 %s193, 1
        %s913 = sand.u32 %s193, 1
        %s914 = smul.addr %s913, 64
        %s915 = scalar_lea.vmem [#allocation2], %s914
        // Predicated region
        $region45: #{conv_bimla_forward.2} parent=43 // pred_check
          %p916 = pneg %p203
        $region46: #{conv_bimla_forward.2} parent=43 // pred_check_branch
          %918 = sbr.rel (%p916) target = $region48
        $region47: #{conv_bimla_forward.2} parent=43 // pred_region
          %s919 = smul.addr %s21, 2
          %s920 = sadd.s32 %s22, %s919
          %s921 = smul.addr %s920, 4
          %s922 = scalar_lea.vmem %s6, %s921
          // Predicated region
          $region49: #{conv_bimla_forward.2} parent=47 // pred_check
            _
          $region50: #{conv_bimla_forward.2} parent=47 // pred_check_branch
            %924 = sbr.rel (0) target = $region52
          $region51: #{conv_bimla_forward.2} parent=47 // pred_region
            // Predicated region
            $region53: #{conv_bimla_forward.2} parent=51 // pred_check
              _
            $region54: #{conv_bimla_forward.2} parent=51 // pred_check_branch
              %926 = sbr.rel target = $region56
            $region55: #{conv_bimla_forward.2} parent=51 // pred_region
              // Predicated region
              $region68: #{conv_bimla_forward.2} parent=55 // pred_check
                _
              $region69: #{conv_bimla_forward.2} parent=55 // pred_check_branch
                %971 = sbr.rel (0) target = $region71
              $region70: #{conv_bimla_forward.2} parent=55 // pred_region
                loop: start=0, step=1, limit=1
                $region72: #{conv_bimla_forward.2} parent=70 // loop_pre_header
                  _
                $region73: #{conv_bimla_forward.2} parent=70 // loop_header
                  %s973 = sphi 0, %s977
                  %p974 = scmp.ge.s32.totalorder %s973, 1
                  %s978 = sphi %s915, %s915
                  %s979 = sphi %s922, %s922
                $region74: #{conv_bimla_forward.2} parent=70 // loop_header_branch
                  %976 = sbr.rel (%p974) target = $region78
                $region75: #{conv_bimla_forward.2} parent=70 // loop_body
                  _
                $region76: #{conv_bimla_forward.2} parent=70 // loop_footer
                  %s977 = sadd.s32 1, %s973
                $region77: #{conv_bimla_forward.2} parent=70 // loop_footer_branch
                  %972 = sbr.rel target = $region73
                $region78: #{conv_bimla_forward.2} parent=70 // loop_exit
                  _
                loop: start=0, step=1, limit=1
                $region79: #{conv_bimla_forward.2} parent=70 // loop_pre_header
                  _
                $region80: #{conv_bimla_forward.2} parent=70 // loop_header
                  %s982 = sphi 0, %s986
                  %p983 = scmp.ge.s32.totalorder %s982, 1
                  %s987 = sphi %s915, %s915
                  %s988 = sphi %s922, %s922
                $region81: #{conv_bimla_forward.2} parent=70 // loop_header_branch
                  %985 = sbr.rel (%p983) target = $region85
                $region82: #{conv_bimla_forward.2} parent=70 // loop_body
                  %v989 = vld [vmem:[%s987] sm:$0xf]
                  %990 = vst [vmem:[%s988] sm:$0xf] %v989
                  %v991 = vld [vmem:[%s987 + $0x4] sm:$0xf]
                  %992 = vst [vmem:[%s988 + $0x4] sm:$0xf] %v991
                  %v993 = vld [vmem:[%s987 + $0x8] sm:$0xf]
                  %994 = vst [vmem:[%s988 + $0x10] sm:$0xf] %v993
                  %v995 = vld [vmem:[%s987 + $0xc] sm:$0xf]
                  %996 = vst [vmem:[%s988 + $0x14] sm:$0xf] %v995
                  %v997 = vld [vmem:[%s987 + $0x10] sm:$0xf]
                  %998 = vst [vmem:[%s988 + $0x20] sm:$0xf] %v997
                  %v999 = vld [vmem:[%s987 + $0x14] sm:$0xf]
                  %1000 = vst [vmem:[%s988 + $0x24] sm:$0xf] %v999
                  %v1001 = vld [vmem:[%s987 + $0x18] sm:$0xf]
                  %1002 = vst [vmem:[%s988 + $0x30] sm:$0xf] %v1001
                  %v1003 = vld [vmem:[%s987 + $0x1c] sm:$0xf]
                  %1004 = vst [vmem:[%s988 + $0x34] sm:$0xf] %v1003
                  %v1005 = vld [vmem:[%s987 + $0x20] sm:$0xf]
                  %1006 = vst [vmem:[%s988 + $0x40] sm:$0xf] %v1005
                  %v1007 = vld [vmem:[%s987 + $0x24] sm:$0xf]
                  %1008 = vst [vmem:[%s988 + $0x44] sm:$0xf] %v1007
                  %v1009 = vld [vmem:[%s987 + $0x28] sm:$0xf]
                  %1010 = vst [vmem:[%s988 + $0x50] sm:$0xf] %v1009
                  %v1011 = vld [vmem:[%s987 + $0x2c] sm:$0xf]
                  %1012 = vst [vmem:[%s988 + $0x54] sm:$0xf] %v1011
                  %v1013 = vld [vmem:[%s987 + $0x30] sm:$0xf]
                  %1014 = vst [vmem:[%s988 + $0x60] sm:$0xf] %v1013
                  %v1015 = vld [vmem:[%s987 + $0x34] sm:$0xf]
                  %1016 = vst [vmem:[%s988 + $0x64] sm:$0xf] %v1015
                  %v1017 = vld [vmem:[%s987 + $0x38] sm:$0xf]
                  %1018 = vst [vmem:[%s988 + $0x70] sm:$0xf] %v1017
                  %v1019 = vld [vmem:[%s987 + $0x3c] sm:$0xf]
                  %1020 = vst [vmem:[%s988 + $0x74] sm:$0xf] %v1019
                $region83: #{conv_bimla_forward.2} parent=70 // loop_footer
                  %s986 = sadd.s32 1, %s982
                $region84: #{conv_bimla_forward.2} parent=70 // loop_footer_branch
                  %981 = sbr.rel target = $region80
                $region85: #{conv_bimla_forward.2} parent=70 // loop_exit
                  _
              $region71: #{conv_bimla_forward.2} parent=55 // pred_fallthru
                _
            $region56: #{conv_bimla_forward.2} parent=51 // pred_fallthru
              _
            // Predicated region
            $region57: #{conv_bimla_forward.2} parent=51 // pred_check
              _
            $region58: #{conv_bimla_forward.2} parent=51 // pred_check_branch
              %928 = sbr.rel (0) target = $region60
            $region59: #{conv_bimla_forward.2} parent=51 // pred_region
              loop: start=0, step=1, limit=1
              $region61: #{conv_bimla_forward.2} parent=59 // loop_pre_header
                _
              $region62: #{conv_bimla_forward.2} parent=59 // loop_header
                %s931 = sphi 0, %s935
                %p932 = scmp.ge.s32.totalorder %s931, 1
                %s936 = sphi %s915, %s915
                %s937 = sphi %s922, %s922
              $region63: #{conv_bimla_forward.2} parent=59 // loop_header_branch
                %934 = sbr.rel (%p932) target = $region67
              $region64: #{conv_bimla_forward.2} parent=59 // loop_body
                %v938 = vld [vmem:[%s936] sm:$0xf]
                %939 = vst [vmem:[%s937] sm:$0xf] %v938
                %v940 = vld [vmem:[%s936 + $0x4] sm:$0xf]
                %941 = vst [vmem:[%s937 + $0x4] sm:$0xf] %v940
                %v942 = vld [vmem:[%s936 + $0x8] sm:$0xf]
                %943 = vst [vmem:[%s937 + $0x10] sm:$0xf] %v942
                %v944 = vld [vmem:[%s936 + $0xc] sm:$0xf]
                %945 = vst [vmem:[%s937 + $0x14] sm:$0xf] %v944
                %v946 = vld [vmem:[%s936 + $0x10] sm:$0xf]
                %947 = vst [vmem:[%s937 + $0x20] sm:$0xf] %v946
                %v948 = vld [vmem:[%s936 + $0x14] sm:$0xf]
                %949 = vst [vmem:[%s937 + $0x24] sm:$0xf] %v948
                %v950 = vld [vmem:[%s936 + $0x18] sm:$0xf]
                %951 = vst [vmem:[%s937 + $0x30] sm:$0xf] %v950
                %v952 = vld [vmem:[%s936 + $0x1c] sm:$0xf]
                %953 = vst [vmem:[%s937 + $0x34] sm:$0xf] %v952
                %v954 = vld [vmem:[%s936 + $0x20] sm:$0xf]
                %955 = vst [vmem:[%s937 + $0x40] sm:$0xf] %v954
                %v956 = vld [vmem:[%s936 + $0x24] sm:$0xf]
                %957 = vst [vmem:[%s937 + $0x44] sm:$0xf] %v956
                %v958 = vld [vmem:[%s936 + $0x28] sm:$0xf]
                %959 = vst [vmem:[%s937 + $0x50] sm:$0xf] %v958
                %v960 = vld [vmem:[%s936 + $0x2c] sm:$0xf]
                %961 = vst [vmem:[%s937 + $0x54] sm:$0xf] %v960
                %v962 = vld [vmem:[%s936 + $0x30] sm:$0xf]
                %963 = vst [vmem:[%s937 + $0x60] sm:$0xf] %v962
                %v964 = vld [vmem:[%s936 + $0x34] sm:$0xf]
                %965 = vst [vmem:[%s937 + $0x64] sm:$0xf] %v964
                %v966 = vld [vmem:[%s936 + $0x38] sm:$0xf]
                %967 = vst [vmem:[%s937 + $0x70] sm:$0xf] %v966
                %v968 = vld [vmem:[%s936 + $0x3c] sm:$0xf]
                %969 = vst [vmem:[%s937 + $0x74] sm:$0xf] %v968
              $region65: #{conv_bimla_forward.2} parent=59 // loop_footer
                %s935 = sadd.s32 1, %s931
              $region66: #{conv_bimla_forward.2} parent=59 // loop_footer_branch
                %930 = sbr.rel target = $region62
              $region67: #{conv_bimla_forward.2} parent=59 // loop_exit
                _
            $region60: #{conv_bimla_forward.2} parent=51 // pred_fallthru
              _
          $region52: #{conv_bimla_forward.2} parent=47 // pred_fallthru
            _
          %1021 = vnop
        $region48: #{conv_bimla_forward.2} parent=43 // pred_fallthru
          _
      $region44: #{conv_bimla_forward.2} parent=5 // pred_fallthru
        _
      %p1022 = scmp.le.s32.totalorder 2, %s12
      // Predicated region
      $region86: #{conv_bimla_forward.2} parent=5 // pred_check
        %p1023 = pneg %p1022
      $region87: #{conv_bimla_forward.2} parent=5 // pred_check_branch
        %1025 = sbr.rel (%p1023) target = $region89
      $region88: #{conv_bimla_forward.2} parent=5 // pred_region
        %s1026 = ssub.s32 %s12, 2
        // Predicated region
        $region90: #{conv_bimla_forward.2} parent=88 // pred_check
          %p1027 = pneg %p209
        $region91: #{conv_bimla_forward.2} parent=88 // pred_check_branch
          %1029 = sbr.rel (%p1027) target = $region93
        $region92: #{conv_bimla_forward.2} parent=88 // pred_region
          %s1030 = sand.u32 %s194, 1
          %s1031 = sand.u32 %s194, 1
          %s1032 = smul.addr %s1031, 64
          %s1033 = scalar_lea.vmem [#allocation2], %s1032
        $region93: #{conv_bimla_forward.2} parent=88 // pred_fallthru
          _
      $region89: #{conv_bimla_forward.2} parent=5 // pred_fallthru
        _
    $region6: #{conv_bimla_forward.2} parent=1 // loop_footer
      %s16 = sadd.s32 1, %s12
    $region7: #{conv_bimla_forward.2} parent=1 // loop_footer_branch
      %11 = sbr.rel target = $region3
    $region8: #{conv_bimla_forward.2} parent=1 // loop_exit
      _

// kernel: conv_bimla_forward.3
$region0: #{conv_bimla_forward.3}
  #allocation0 [shape = 'u32[]', space=smem, size = 0x4, offset = 0x4, fixed_abs, tag = 'smem constant byte address 0x4 - core index']
  #allocation1 [shape = 'u32[144,128]{1,0:T(1,128)}', space=vmem, size = 0x12000, scoped, tag = 'internal scratch']
  %s0 = inlined_call_operand.vmem [shape: bf16[8,2,16,64], index: 0, kind: input, shape index: {}]
  %s1 = inlined_call_operand.vmem [shape: bf16[8,9,16,16], index: 1, kind: input, shape index: {}]
  %s2 = inlined_call_operand.vmem [shape: f32[8,16,1], index: 2, kind: input, shape index: {}]
  %s3 = inlined_call_operand.vmem [shape: bf16[9,64], index: 3, kind: input, shape index: {}]
  %s4 = inlined_call_operand.vmem [shape: f32[8,2,16,64], index: 4, kind: output, shape index: {}]
  %s5 = sld [smem:[#allocation0]]
  $region49: #{conv_bimla_forward.3} parent=0
    _
  %s7 = ssub.s32 1, %s5
  %s8 = scalar_select 0, %s7, %s5
  loop: start=0, step=1, limit=18
  $region2: #{conv_bimla_forward.3} parent=0 // loop_pre_header
    _
  $region3: #{conv_bimla_forward.3} parent=0 // loop_header
    %s10 = sphi 0, %s14
    %p11 = scmp.ge.s32.totalorder %s10, 18
    %s17 = sphi 0, %s29
    %s18 = sphi 0, %s25
    %s19 = sphi 0, %s17
    %s20 = sphi 0, %s18
    %s21 = sphi 0, %s19
    %s22 = sphi 0, %s20
    %s34 = sphi 0, %s36
    %s37 = sphi 0, %s34
    %s38 = sphi 0, %s37
    %s54 = sphi 0, %s38
    %s60 = sphi 0, %s62
    %s63 = sphi 0, %s60
    %s64 = sphi 0, %s63
    %s80 = sphi 0, %s64
    %s86 = sphi 0, %s88
    %s89 = sphi 0, %s86
    %s90 = sphi 0, %s89
    %s106 = sphi 0, %s90
    %s110 = sphi 0, %s110
    %s112 = sphi 0, %s110
    %s113 = sphi 0, %s112
    %s127 = sphi 0, %s113
    %s135 = sphi 0, %s137
    %s138 = sphi 0, %s135
    %s139 = sphi 0, %s138
    %s155 = sphi 0, %s139
  $region4: #{conv_bimla_forward.3} parent=0 // loop_header_branch
    %13 = sbr.rel (%p11) target = $region8
  $region5: #{conv_bimla_forward.3} parent=0 // loop_body
    %s15 = ssub.s32 %s10, 1
    %s16 = ssub.s32 %s10, 2
    %s23 = sadd.s32 1, %s18
    %p24 = scmp.ge.s32.totalorder %s23, 2
    %s25 = scalar_select %p24, 0, %s23
    %s26 = sadd.s32 1, %s17
    %s27 = scalar_select %p24, %s26, %s17
    %p28 = scmp.ge.s32.totalorder %s27, 8
    %s29 = scalar_select %p28, 0, %s27
    %s30 = ssub.s32 %s17, %s29
    %s31 = ssub.s32 %s18, %s25
    %s32 = sor.u32 %s30, %s31
    %p33 = scmp.eq.s32.totalorder %s32, 0
    %s35 = sadd.s32 %s34, 1
    %s36 = scalar_select %p33, %s34, %s35
    %p39 = pneg %p33
    %p40 = scmp.eq.s32.totalorder %s10, 15
    %p41 = por %p39, %p40
    %p42 = scmp.ne.s32.totalorder %s34, %s37
    %p43 = scmp.eq.s32.totalorder %s10, 0
    %p44 = por %p42, %p43
    %p45 = scmp.ne.s32.totalorder %s34, %s37
    %p46 = scmp.eq.s32.totalorder %s15, 15
    %p47 = por %p45, %p46
    %p48 = scmp.ne.s32.totalorder %s37, %s38
    %p49 = scmp.eq.s32.totalorder %s15, 0
    %p50 = por %p48, %p49
    %p51 = scmp.ne.s32.totalorder %s37, %s38
    %p52 = scmp.eq.s32.totalorder %s16, 15
    %p53 = por %p51, %p52
    %p55 = scmp.ne.s32.totalorder %s38, %s54
    %p56 = scmp.eq.s32.totalorder %s16, 0
    %p57 = por %p55, %p56
    %s58 = ssub.s32 %s17, %s29
    %p59 = scmp.eq.s32.totalorder %s58, 0
    %s61 = sadd.s32 %s60, 1
    %s62 = scalar_select %p59, %s60, %s61
    %p65 = pneg %p59
    %p66 = scmp.eq.s32.totalorder %s10, 15
    %p67 = por %p65, %p66
    %p68 = scmp.ne.s32.totalorder %s60, %s63
    %p69 = scmp.eq.s32.totalorder %s10, 0
    %p70 = por %p68, %p69
    %p71 = scmp.ne.s32.totalorder %s60, %s63
    %p72 = scmp.eq.s32.totalorder %s15, 15
    %p73 = por %p71, %p72
    %p74 = scmp.ne.s32.totalorder %s63, %s64
    %p75 = scmp.eq.s32.totalorder %s15, 0
    %p76 = por %p74, %p75
    %p77 = scmp.ne.s32.totalorder %s63, %s64
    %p78 = scmp.eq.s32.totalorder %s16, 15
    %p79 = por %p77, %p78
    %p81 = scmp.ne.s32.totalorder %s64, %s80
    %p82 = scmp.eq.s32.totalorder %s16, 0
    %p83 = por %p81, %p82
    %s84 = ssub.s32 %s17, %s29
    %p85 = scmp.eq.s32.totalorder %s84, 0
    %s87 = sadd.s32 %s86, 1
    %s88 = scalar_select %p85, %s86, %s87
    %p91 = pneg %p85
    %p92 = scmp.eq.s32.totalorder %s10, 15
    %p93 = por %p91, %p92
    %p94 = scmp.ne.s32.totalorder %s86, %s89
    %p95 = scmp.eq.s32.totalorder %s10, 0
    %p96 = por %p94, %p95
    %p97 = scmp.ne.s32.totalorder %s86, %s89
    %p98 = scmp.eq.s32.totalorder %s15, 15
    %p99 = por %p97, %p98
    %p100 = scmp.ne.s32.totalorder %s89, %s90
    %p101 = scmp.eq.s32.totalorder %s15, 0
    %p102 = por %p100, %p101
    %p103 = scmp.ne.s32.totalorder %s89, %s90
    %p104 = scmp.eq.s32.totalorder %s16, 15
    %p105 = por %p103, %p104
    %p107 = scmp.ne.s32.totalorder %s90, %s106
    %p108 = scmp.eq.s32.totalorder %s16, 0
    %p109 = por %p107, %p108
    %s111 = sadd.s32 %s110, 1
    %p114 = scmp.eq.s32.totalorder %s10, 15
    %p115 = scmp.ne.s32.totalorder %s110, %s112
    %p116 = scmp.eq.s32.totalorder %s10, 0
    %p117 = por %p115, %p116
    %p118 = scmp.ne.s32.totalorder %s110, %s112
    %p119 = scmp.eq.s32.totalorder %s15, 15
    %p120 = por %p118, %p119
    %p121 = scmp.ne.s32.totalorder %s112, %s113
    %p122 = scmp.eq.s32.totalorder %s15, 0
    %p123 = por %p121, %p122
    %p124 = scmp.ne.s32.totalorder %s112, %s113
    %p125 = scmp.eq.s32.totalorder %s16, 15
    %p126 = por %p124, %p125
    %p128 = scmp.ne.s32.totalorder %s113, %s127
    %p129 = scmp.eq.s32.totalorder %s16, 0
    %p130 = por %p128, %p129
    %s131 = ssub.s32 %s17, %s29
    %s132 = ssub.s32 %s18, %s25
    %s133 = sor.u32 %s131, %s132
    %p134 = scmp.eq.s32.totalorder %s133, 0
    %s136 = sadd.s32 %s135, 1
    %s137 = scalar_select %p134, %s135, %s136
    %p140 = pneg %p134
    %p141 = scmp.eq.s32.totalorder %s10, 15
    %p142 = por %p140, %p141
    %p143 = scmp.ne.s32.totalorder %s135, %s138
    %p144 = scmp.eq.s32.totalorder %s10, 0
    %p145 = por %p143, %p144
    %p146 = scmp.ne.s32.totalorder %s135, %s138
    %p147 = scmp.eq.s32.totalorder %s15, 15
    %p148 = por %p146, %p147
    %p149 = scmp.ne.s32.totalorder %s138, %s139
    %p150 = scmp.eq.s32.totalorder %s15, 0
    %p151 = por %p149, %p150
    %p152 = scmp.ne.s32.totalorder %s138, %s139
    %p153 = scmp.eq.s32.totalorder %s16, 15
    %p154 = por %p152, %p153
    %p156 = scmp.ne.s32.totalorder %s139, %s155
    %p157 = scmp.eq.s32.totalorder %s16, 0
    %p158 = por %p156, %p157
    %p159 = scmp.le.s32.totalorder 1, %s10
    %p160 = scmp.lt.s32.totalorder %s10, 17
    %p161 = pnand %p159, %p160
    %p162 = pneg %p161
    // Predicated region
    $region9: #{conv_bimla_forward.3} parent=5 // pred_check
      _
    $region10: #{conv_bimla_forward.3} parent=5 // pred_check_branch
      %164 = sbr.rel (%p161) target = $region12
    $region11: #{conv_bimla_forward.3} parent=5 // pred_region
      %s165 = ssub.s32 %s10, 1
      // Predicated region
      $region13: #{conv_bimla_forward.3} parent=11 // pred_check
        %p166 = pneg %p123
      $region14: #{conv_bimla_forward.3} parent=11 // pred_check_branch
        %168 = sbr.rel (%p166) target = $region16
      $region15: #{conv_bimla_forward.3} parent=11 // pred_region
        _
      $region16: #{conv_bimla_forward.3} parent=11 // pred_fallthru
        _
    $region12: #{conv_bimla_forward.3} parent=5 // pred_fallthru
      _
    %p169 = scmp.lt.s32.totalorder %s10, 16
    // Predicated region
    $region17: #{conv_bimla_forward.3} parent=5 // pred_check
      %p170 = pneg %p169
    $region18: #{conv_bimla_forward.3} parent=5 // pred_check_branch
      %172 = sbr.rel (%p170) target = $region20
    $region19: #{conv_bimla_forward.3} parent=5 // pred_region
      // Predicated region
      $region21: #{conv_bimla_forward.3} parent=19 // pred_check
        %p173 = pneg %p44
      $region22: #{conv_bimla_forward.3} parent=19 // pred_check_branch
        %175 = sbr.rel (%p173) target = $region24
      $region23: #{conv_bimla_forward.3} parent=19 // pred_region
        %p176 = scmp.lt.s32.totalorder %s17, 7
        %s177 = scalar_select %p176, %s17, 7
        %p178 = scmp.lt.s32.totalorder %s18, 1
        %s179 = scalar_select %p178, %s18, 1
        %s180 = smul.addr %s179, 2
        %s181 = smul.addr %s177, 4
        %s182 = sadd.s32 %s180, %s181
        %s183 = smul.addr %s182, 4
        %s184 = scalar_lea.vmem %s0, %s183
      $region24: #{conv_bimla_forward.3} parent=19 // pred_fallthru
        _
      // Predicated region
      $region25: #{conv_bimla_forward.3} parent=19 // pred_check
        %p185 = pneg %p70
      $region26: #{conv_bimla_forward.3} parent=19 // pred_check_branch
        %187 = sbr.rel (%p185) target = $region28
      $region27: #{conv_bimla_forward.3} parent=19 // pred_region
        %p188 = scmp.lt.s32.totalorder %s17, 7
        %s189 = scalar_select %p188, %s17, 7
        %s190 = smul.addr %s189, 18
        %s191 = smul.addr %s190, 4
        %s192 = scalar_lea.vmem %s1, %s191
      $region28: #{conv_bimla_forward.3} parent=19 // pred_fallthru
        _
      // Predicated region
      $region29: #{conv_bimla_forward.3} parent=19 // pred_check
        %p193 = pneg %p96
      $region30: #{conv_bimla_forward.3} parent=19 // pred_check_branch
        %195 = sbr.rel (%p193) target = $region32
      $region31: #{conv_bimla_forward.3} parent=19 // pred_region
        %p196 = scmp.lt.s32.totalorder %s17, 7
        %s197 = scalar_select %p196, %s17, 7
        %s198 = smul.addr %s197, 2
        %s199 = smul.addr %s198, 8
        %s200 = scalar_lea.vmem %s2, %s199
      $region32: #{conv_bimla_forward.3} parent=19 // pred_fallthru
        _
    $region20: #{conv_bimla_forward.3} parent=5 // pred_fallthru
      _
    %p201 = scmp.le.s32.totalorder 1, %s10
    %p202 = scmp.lt.s32.totalorder %s10, 17
    %p203 = pnand %p201, %p202
    %p204 = pneg %p203
    // Predicated region
    $region33: #{conv_bimla_forward.3} parent=5 // pred_check
      _
    $region34: #{conv_bimla_forward.3} parent=5 // pred_check_branch
      %206 = sbr.rel (%p203) target = $region36
    $region35: #{conv_bimla_forward.3} parent=5 // pred_region
      %s207 = ssub.s32 %s10, 1
      %p208 = scmp.lt.s32.totalorder %s19, 7
      %s209 = scalar_select %p208, %s19, 7
      %p210 = scmp.lt.s32.totalorder %s20, 1
      %s211 = scalar_select %p210, %s20, 1
      %s212 = smul.addr %s211, 2
      %s213 = smul.addr %s209, 4
      %s214 = sadd.s32 %s212, %s213
      %s215 = smul.addr %s214, 4
      %s216 = scalar_lea.vmem %s0, %s215
      %p217 = pneg %p50
      %p218 = pneg %p47
      %p219 = scmp.lt.s32.totalorder %s19, 7
      %s220 = scalar_select %p219, %s19, 7
      %s221 = smul.addr %s220, 18
      %s222 = smul.addr %s221, 4
      %s223 = scalar_lea.vmem %s1, %s222
      %p224 = pneg %p76
      %p225 = pneg %p73
      %p226 = scmp.lt.s32.totalorder %s19, 7
      %s227 = scalar_select %p226, %s19, 7
      %s228 = smul.addr %s227, 2
      %s229 = smul.addr %s228, 8
      %s230 = scalar_lea.vmem %s2, %s229
      %p231 = pneg %p102
      %p232 = pneg %p99
      %p233 = pneg %p123
      %p234 = pneg %p120
      %p235 = pneg %p151
      %p236 = pneg %p148
      %p237 = scmp.lt.s32.totalorder %s19, 7
      %s238 = scalar_select %p237, %s19, 7
      %p239 = scmp.lt.s32.totalorder %s20, 1
      %s240 = scalar_select %p239, %s20, 1
      %s241 = smul.addr %s240, 2
      %s242 = smul.addr %s238, 4
      %s243 = sadd.s32 %s241, %s242
      %s244 = smul.addr %s243, 8
      %s245 = scalar_lea.vmem %s4, %s244
      %p246 = scmp.lt.s32.totalorder %s19, 7
      %s247 = scalar_select %p246, %s19, 7
      %p248 = scmp.lt.s32.totalorder %s20, 1
      %s249 = scalar_select %p248, %s20, 1
      %s250 = smul.addr %s249, 2
      %s251 = smul.addr %s247, 4
      %s252 = sadd.s32 %s250, %s251
      %s253 = smul.addr %s252, 4
      %s254 = scalar_lea.vmem %s0, %s253
      %p255 = scmp.lt.s32.totalorder %s19, 7
      %s256 = scalar_select %p255, %s19, 7
      %s257 = smul.addr %s256, 18
      %s258 = smul.addr %s257, 4
      %s259 = scalar_lea.vmem %s1, %s258
      %p260 = scmp.lt.s32.totalorder %s19, 7
      %s261 = scalar_select %p260, %s19, 7
      %s262 = smul.addr %s261, 2
      %s263 = smul.addr %s262, 8
      %s264 = scalar_lea.vmem %s2, %s263
      %p265 = scmp.lt.s32.totalorder %s19, 7
      %s266 = scalar_select %p265, %s19, 7
      %p267 = scmp.lt.s32.totalorder %s20, 1
      %s268 = scalar_select %p267, %s20, 1
      %s269 = smul.addr %s268, 2
      %s270 = smul.addr %s266, 4
      %s271 = sadd.s32 %s269, %s270
      %s272 = smul.addr %s271, 8
      %s273 = scalar_lea.vmem %s4, %s272
      %v275 = vld [vmem:[%s254] sm:$0xf]
      %v276 = vld [vmem:[%s254 + $0x4] sm:$0xf]
      %v277 = vld [vmem:[%s3] sm:$0xf]
      %v278 = vld [vmem:[%s3 + $0x4] sm:$0x1]
      %v281 = vunpack.c.l.b16 %v275
      %v282 = vunpack.c.l.b16 %v276
      %v283 = vpack.c.b16 %v282, %v281
      %284 = vrot.lane.b32.xlu0 %v283, 73
      %v285 = vpop.permute.xlu0 %284
      %286 = vrot.lane.b32.xlu0 %v283, 9
      %v287 = vpop.permute.xlu0 %286
      %vm288 = vcmask 72704
      %v291 = vsel %vm288, %v285, %v287
      %v294 = vpack.i.b16 %v277, %v277
      %v296 = vlaneseq
      %v297 = vshrl.u32 %v296, 7
      %v298 = vsub.s32 0, %v297
      %v299 = vrot.slane %v294, %v298
      %v300 = vmul.bf16 %v291, %v299
      %v301 = vld [vmem:[%s259] sm:$0xf]
      %v302 = vld [vmem:[%s259 + $0x4] sm:$0xf]
      %303 = vrot.lane.b32.xlu0 %v283, 72
      %v304 = vpop.permute.xlu0 %303
      %305 = vrot.lane.b32.xlu0 %v283, 8
      %v306 = vpop.permute.xlu0 %305
      %vm307 = vcmask 64512
      %v310 = vsel %vm307, %v304, %v306
      %v312 = vshrl.u32 %v277, 16
      %v313 = vpack.i.b16 %v312, %v312
      %v315 = vlaneseq
      %v316 = vshrl.u32 %v315, 7
      %v317 = vsub.s32 0, %v316
      %v318 = vrot.slane %v313, %v317
      %v319 = vmul.bf16 %v310, %v318
      %s320 = scalar_lea.vmem %s259, 8
      %v321 = vld [vmem:[%s320] sm:$0xf]
      %v322 = vld [vmem:[%s320 + $0x4] sm:$0xf]
      %v325 = vunpack.c.l.b16 %v321
      %v326 = vunpack.c.l.b16 %v322
      %v327 = vpack.c.b16 %v326, %v325
      %vm328 = vcmask 130048
      %v330 = vsel %vm328, %v327, 0
      %332 = vmatprep.subr.bf16.mxu0 0
      %333 = vmatpush1.bf16.msra.mxu0 %v319
      %334 = vmatprep.subr.bf16.mxu0 0
      %335 = vmatpush1.bf16.msra.mxu0 0
      %336 = vmatprep.subr.bf16.mxu0 0
      %337 = vmatpush1.bf16.msra.mxu0 0
      %338 = vmatprep.subr.bf16.mxu0 0
      %339 = vmatpush1.bf16.msra.mxu0 0
      %340 = vmatprep.subr.bf16.mxu0 0
      %341 = vmatpush1.bf16.msra.mxu0 0
      %342 = vmatprep.subr.bf16.mxu0 0
      %343 = vmatpush1.bf16.msra.mxu0 0
      %344 = vmatprep.subr.bf16.mxu0 0
      %345 = vmatpush1.bf16.msra.mxu0 0
      %346 = vmatprep.subr.bf16.mxu0 0
      %347 = vmatpush1.bf16.msra.mxu0 0
      %348 = vmatprep.subr.bf16.mxu0 0
      %349 = vmatpush1.bf16.msra.mxu0 0
      %350 = vmatprep.subr.bf16.mxu0 0
      %351 = vmatpush1.bf16.msra.mxu0 0
      %352 = vmatprep.subr.bf16.mxu0 0
      %353 = vmatpush1.bf16.msra.mxu0 0
      %354 = vmatprep.subr.bf16.mxu0 0
      %355 = vmatpush1.bf16.msra.mxu0 0
      %356 = vmatprep.subr.bf16.mxu0 0
      %357 = vmatpush1.bf16.msra.mxu0 0
      %358 = vmatprep.subr.bf16.mxu0 0
      %359 = vmatpush1.bf16.msra.mxu0 0
      %360 = vmatprep.subr.bf16.mxu0 0
      %361 = vmatpush1.bf16.msra.mxu0 0
      %362 = vmatprep.subr.bf16.mxu0 0
      %363 = vmatpush1.bf16.msra.mxu0 0
      %364 = vmatprep.mubr.bf16.mxu0 0
      %365 = vmatmul.mubr.bf16.gmra.mrb[0].mxu0 %v330
      %v366 = vpop.f32.mrb[0].mxu0
      %v367 = vadd.f32 0.0, %v366
      %v368 = vpop.f32.mrb[0].mxu0
      %v369 = vpop.f32.mrb[0].mxu0
      %v370 = vadd.f32 0.0, %v369
      %v371 = vpop.f32.mrb[0].mxu0
      %372 = vdwg.mxu0
      %v375 = vunpack.c.l.b16 %v301
      %v376 = vunpack.c.l.b16 %v302
      %v377 = vpack.c.b16 %v376, %v375
      %v379 = vsel %vm328, %v377, 0
      %381 = vmatprep.subr.bf16.mxu0 0
      %382 = vmatpush1.bf16.msra.mxu0 %v300
      %383 = vmatprep.subr.bf16.mxu0 0
      %384 = vmatpush1.bf16.msra.mxu0 0
      %385 = vmatprep.subr.bf16.mxu0 0
      %386 = vmatpush1.bf16.msra.mxu0 0
      %387 = vmatprep.subr.bf16.mxu0 0
      %388 = vmatpush1.bf16.msra.mxu0 0
      %389 = vmatprep.subr.bf16.mxu0 0
      %390 = vmatpush1.bf16.msra.mxu0 0
      %391 = vmatprep.subr.bf16.mxu0 0
      %392 = vmatpush1.bf16.msra.mxu0 0
      %393 = vmatprep.subr.bf16.mxu0 0
      %394 = vmatpush1.bf16.msra.mxu0 0
      %395 = vmatprep.subr.bf16.mxu0 0
      %396 = vmatpush1.bf16.msra.mxu0 0
      %397 = vmatprep.subr.bf16.mxu0 0
      %398 = vmatpush1.bf16.msra.mxu0 0
      %399 = vmatprep.subr.bf16.mxu0 0
      %400 = vmatpush1.bf16.msra.mxu0 0
      %401 = vmatprep.subr.bf16.mxu0 0
      %402 = vmatpush1.bf16.msra.mxu0 0
      %403 = vmatprep.subr.bf16.mxu0 0
      %404 = vmatpush1.bf16.msra.mxu0 0
      %405 = vmatprep.subr.bf16.mxu0 0
      %406 = vmatpush1.bf16.msra.mxu0 0
      %407 = vmatprep.subr.bf16.mxu0 0
      %408 = vmatpush1.bf16.msra.mxu0 0
      %409 = vmatprep.subr.bf16.mxu0 0
      %410 = vmatpush1.bf16.msra.mxu0 0
      %411 = vmatprep.subr.bf16.mxu0 0
      %412 = vmatpush1.bf16.msra.mxu0 0
      %413 = vmatprep.mubr.bf16.mxu0 0
      %414 = vmatmul.mubr.bf16.gmra.mrb[0].mxu0 %v379
      %v415 = vpop.f32.mrb[0].mxu0
      %v416 = vadd.f32 %v367, %v415
      %v417 = vpop.f32.mrb[0].mxu0
      %v418 = vpop.f32.mrb[0].mxu0
      %v419 = vadd.f32 %v370, %v418
      %v420 = vpop.f32.mrb[0].mxu0
      %421 = vdwg.mxu0
      %422 = vrot.lane.b32.xlu0 %v283, 71
      %v423 = vpop.permute.xlu0 %422
      %424 = vrot.lane.b32.xlu0 %v283, 7
      %v425 = vpop.permute.xlu0 %424
      %vm426 = vcmask 56320
      %v429 = vsel %vm426, %v423, %v425
      %v431 = vlaneseq
      %v432 = vshrl.u32 %v431, 7
      %v433 = vsub.s32 1, %v432
      %v434 = vrot.slane %v294, %v433
      %v435 = vmul.bf16 %v429, %v434
      %s436 = scalar_lea.vmem %s259, 16
      %v437 = vld [vmem:[%s436] sm:$0xf]
      %v438 = vld [vmem:[%s436 + $0x4] sm:$0xf]
      %v441 = vunpack.c.l.b16 %v437
      %v442 = vunpack.c.l.b16 %v438
      %v443 = vpack.c.b16 %v442, %v441
      %v445 = vsel %vm328, %v443, 0
      %447 = vmatprep.subr.bf16.mxu0 0
      %448 = vmatpush1.bf16.msra.mxu0 %v435
      %449 = vmatprep.subr.bf16.mxu0 0
      %450 = vmatpush1.bf16.msra.mxu0 0
      %451 = vmatprep.subr.bf16.mxu0 0
      %452 = vmatpush1.bf16.msra.mxu0 0
      %453 = vmatprep.subr.bf16.mxu0 0
      %454 = vmatpush1.bf16.msra.mxu0 0
      %455 = vmatprep.subr.bf16.mxu0 0
      %456 = vmatpush1.bf16.msra.mxu0 0
      %457 = vmatprep.subr.bf16.mxu0 0
      %458 = vmatpush1.bf16.msra.mxu0 0
      %459 = vmatprep.subr.bf16.mxu0 0
      %460 = vmatpush1.bf16.msra.mxu0 0
      %461 = vmatprep.subr.bf16.mxu0 0
      %462 = vmatpush1.bf16.msra.mxu0 0
      %463 = vmatprep.subr.bf16.mxu0 0
      %464 = vmatpush1.bf16.msra.mxu0 0
      %465 = vmatprep.subr.bf16.mxu0 0
      %466 = vmatpush1.bf16.msra.mxu0 0
      %467 = vmatprep.subr.bf16.mxu0 0
      %468 = vmatpush1.bf16.msra.mxu0 0
      %469 = vmatprep.subr.bf16.mxu0 0
      %470 = vmatpush1.bf16.msra.mxu0 0
      %471 = vmatprep.subr.bf16.mxu0 0
      %472 = vmatpush1.bf16.msra.mxu0 0
      %473 = vmatprep.subr.bf16.mxu0 0
      %474 = vmatpush1.bf16.msra.mxu0 0
      %475 = vmatprep.subr.bf16.mxu0 0
      %476 = vmatpush1.bf16.msra.mxu0 0
      %477 = vmatprep.subr.bf16.mxu0 0
      %478 = vmatpush1.bf16.msra.mxu0 0
      %479 = vmatprep.mubr.bf16.mxu0 0
      %480 = vmatmul.mubr.bf16.gmra.mrb[0].mxu0 %v445
      %v481 = vpop.f32.mrb[0].mxu0
      %v482 = vadd.f32 0.0, %v481
      %v483 = vpop.f32.mrb[0].mxu0
      %v484 = vpop.f32.mrb[0].mxu0
      %v485 = vadd.f32 0.0, %v484
      %v486 = vpop.f32.mrb[0].mxu0
      %487 = vdwg.mxu0
      %v488 = vadd.f32 %v416, %v482
      %v489 = vadd.f32 %v419, %v485
      %490 = vrot.lane.b32.xlu0 %v283, 65
      %v491 = vpop.permute.xlu0 %490
      %492 = vrot.lane.b32.xlu0 %v283, 1
      %v493 = vpop.permute.xlu0 %492
      %vm494 = vcmask 7168
      %v497 = vsel %vm494, %v491, %v493
      %v499 = vlaneseq
      %v500 = vshrl.u32 %v499, 7
      %v501 = vsub.s32 1, %v500
      %v502 = vrot.slane %v313, %v501
      %v503 = vmul.bf16 %v497, %v502
      %s504 = scalar_lea.vmem %s259, 24
      %v505 = vld [vmem:[%s504] sm:$0xf]
      %v506 = vld [vmem:[%s504 + $0x4] sm:$0xf]
      %v509 = vunpack.c.l.b16 %v505
      %v510 = vunpack.c.l.b16 %v506
      %v511 = vpack.c.b16 %v510, %v509
      %v513 = vsel %vm328, %v511, 0
      %515 = vmatprep.subr.bf16.mxu0 0
      %516 = vmatpush1.bf16.msra.mxu0 %v503
      %517 = vmatprep.subr.bf16.mxu0 0
      %518 = vmatpush1.bf16.msra.mxu0 0
      %519 = vmatprep.subr.bf16.mxu0 0
      %520 = vmatpush1.bf16.msra.mxu0 0
      %521 = vmatprep.subr.bf16.mxu0 0
      %522 = vmatpush1.bf16.msra.mxu0 0
      %523 = vmatprep.subr.bf16.mxu0 0
      %524 = vmatpush1.bf16.msra.mxu0 0
      %525 = vmatprep.subr.bf16.mxu0 0
      %526 = vmatpush1.bf16.msra.mxu0 0
      %527 = vmatprep.subr.bf16.mxu0 0
      %528 = vmatpush1.bf16.msra.mxu0 0
      %529 = vmatprep.subr.bf16.mxu0 0
      %530 = vmatpush1.bf16.msra.mxu0 0
      %531 = vmatprep.subr.bf16.mxu0 0
      %532 = vmatpush1.bf16.msra.mxu0 0
      %533 = vmatprep.subr.bf16.mxu0 0
      %534 = vmatpush1.bf16.msra.mxu0 0
      %535 = vmatprep.subr.bf16.mxu0 0
      %536 = vmatpush1.bf16.msra.mxu0 0
      %537 = vmatprep.subr.bf16.mxu0 0
      %538 = vmatpush1.bf16.msra.mxu0 0
      %539 = vmatprep.subr.bf16.mxu0 0
      %540 = vmatpush1.bf16.msra.mxu0 0
      %541 = vmatprep.subr.bf16.mxu0 0
      %542 = vmatpush1.bf16.msra.mxu0 0
      %543 = vmatprep.subr.bf16.mxu0 0
      %544 = vmatpush1.bf16.msra.mxu0 0
      %545 = vmatprep.subr.bf16.mxu0 0
      %546 = vmatpush1.bf16.msra.mxu0 0
      %547 = vmatprep.mubr.bf16.mxu0 0
      %548 = vmatmul.mubr.bf16.gmra.mrb[0].mxu0 %v513
      %v549 = vpop.f32.mrb[0].mxu0
      %v550 = vadd.f32 0.0, %v549
      %v551 = vpop.f32.mrb[0].mxu0
      %v552 = vpop.f32.mrb[0].mxu0
      %v553 = vadd.f32 0.0, %v552
      %v554 = vpop.f32.mrb[0].mxu0
      %555 = vdwg.mxu0
      %v556 = vadd.f32 %v488, %v550
      %v557 = vadd.f32 %v489, %v553
      %v558 = vlaneseq
      %v559 = vshrl.u32 %v558, 7
      %v560 = vsub.s32 2, %v559
      %v561 = vrot.slane %v294, %v560
      %v563 = vunpack.c.l.b16 %v561
      %v564 = vpack.c.b16 %v563, %v563
      %v566 = vmul.bf16 %v275, %v564
      %v567 = vmul.bf16 %v276, %v564
      %s568 = scalar_lea.vmem %s259, 32
      %v569 = vld [vmem:[%s568] sm:$0xf]
      %v570 = vld [vmem:[%s568 + $0x4] sm:$0xf]
      %v573 = vunpack.c.l.b16 %v569
      %v574 = vunpack.c.l.b16 %v570
      %v575 = vpack.c.b16 %v574, %v573
      %v578 = vunpack.c.l.b16 %v566
      %v579 = vunpack.c.l.b16 %v567
      %v580 = vpack.c.b16 %v579, %v578
      %v583 = vsel %vm328, %v575, 0
      %585 = vmatprep.subr.bf16.mxu0 0
      %586 = vmatpush1.bf16.msra.mxu0 %v580
      %587 = vmatprep.subr.bf16.mxu0 0
      %588 = vmatpush1.bf16.msra.mxu0 0
      %589 = vmatprep.subr.bf16.mxu0 0
      %590 = vmatpush1.bf16.msra.mxu0 0
      %591 = vmatprep.subr.bf16.mxu0 0
      %592 = vmatpush1.bf16.msra.mxu0 0
      %593 = vmatprep.subr.bf16.mxu0 0
      %594 = vmatpush1.bf16.msra.mxu0 0
      %595 = vmatprep.subr.bf16.mxu0 0
      %596 = vmatpush1.bf16.msra.mxu0 0
      %597 = vmatprep.subr.bf16.mxu0 0
      %598 = vmatpush1.bf16.msra.mxu0 0
      %599 = vmatprep.subr.bf16.mxu0 0
      %600 = vmatpush1.bf16.msra.mxu0 0
      %601 = vmatprep.subr.bf16.mxu0 0
      %602 = vmatpush1.bf16.msra.mxu0 0
      %603 = vmatprep.subr.bf16.mxu0 0
      %604 = vmatpush1.bf16.msra.mxu0 0
      %605 = vmatprep.subr.bf16.mxu0 0
      %606 = vmatpush1.bf16.msra.mxu0 0
      %607 = vmatprep.subr.bf16.mxu0 0
      %608 = vmatpush1.bf16.msra.mxu0 0
      %609 = vmatprep.subr.bf16.mxu0 0
      %610 = vmatpush1.bf16.msra.mxu0 0
      %611 = vmatprep.subr.bf16.mxu0 0
      %612 = vmatpush1.bf16.msra.mxu0 0
      %613 = vmatprep.subr.bf16.mxu0 0
      %614 = vmatpush1.bf16.msra.mxu0 0
      %615 = vmatprep.subr.bf16.mxu0 0
      %616 = vmatpush1.bf16.msra.mxu0 0
      %617 = vmatprep.mubr.bf16.mxu0 0
      %618 = vmatmul.mubr.bf16.gmra.mrb[0].mxu0 %v583
      %v619 = vpop.f32.mrb[0].mxu0
      %v620 = vadd.f32 0.0, %v619
      %v621 = vpop.f32.mrb[0].mxu0
      %v622 = vpop.f32.mrb[0].mxu0
      %v623 = vadd.f32 0.0, %v622
      %v624 = vpop.f32.mrb[0].mxu0
      %625 = vdwg.mxu0
      %v626 = vadd.f32 %v556, %v620
      %v627 = vadd.f32 %v557, %v623
      %628 = vrot.lane.b32.xlu0 %v283, 127
      %v629 = vpop.permute.xlu0 %628
      %630 = vrot.lane.b32.xlu0 %v283, 63
      %v631 = vpop.permute.xlu0 %630
      %vm632 = vcmask 515072
      %v635 = vsel %vm632, %v629, %v631
      %v637 = vlaneseq
      %v638 = vshrl.u32 %v637, 7
      %v639 = vsub.s32 2, %v638
      %v640 = vrot.slane %v313, %v639
      %v641 = vmul.bf16 %v635, %v640
      %s642 = scalar_lea.vmem %s259, 40
      %v643 = vld [vmem:[%s642] sm:$0xf]
      %v644 = vld [vmem:[%s642 + $0x4] sm:$0xf]
      %v647 = vunpack.c.l.b16 %v643
      %v648 = vunpack.c.l.b16 %v644
      %v649 = vpack.c.b16 %v648, %v647
      %v651 = vsel %vm328, %v649, 0
      %653 = vmatprep.subr.bf16.mxu0 0
      %654 = vmatpush1.bf16.msra.mxu0 %v641
      %655 = vmatprep.subr.bf16.mxu0 0
      %656 = vmatpush1.bf16.msra.mxu0 0
      %657 = vmatprep.subr.bf16.mxu0 0
      %658 = vmatpush1.bf16.msra.mxu0 0
      %659 = vmatprep.subr.bf16.mxu0 0
      %660 = vmatpush1.bf16.msra.mxu0 0
      %661 = vmatprep.subr.bf16.mxu0 0
      %662 = vmatpush1.bf16.msra.mxu0 0
      %663 = vmatprep.subr.bf16.mxu0 0
      %664 = vmatpush1.bf16.msra.mxu0 0
      %665 = vmatprep.subr.bf16.mxu0 0
      %666 = vmatpush1.bf16.msra.mxu0 0
      %667 = vmatprep.subr.bf16.mxu0 0
      %668 = vmatpush1.bf16.msra.mxu0 0
      %669 = vmatprep.subr.bf16.mxu0 0
      %670 = vmatpush1.bf16.msra.mxu0 0
      %671 = vmatprep.subr.bf16.mxu0 0
      %672 = vmatpush1.bf16.msra.mxu0 0
      %673 = vmatprep.subr.bf16.mxu0 0
      %674 = vmatpush1.bf16.msra.mxu0 0
      %675 = vmatprep.subr.bf16.mxu0 0
      %676 = vmatpush1.bf16.msra.mxu0 0
      %677 = vmatprep.subr.bf16.mxu0 0
      %678 = vmatpush1.bf16.msra.mxu0 0
      %679 = vmatprep.subr.bf16.mxu0 0
      %680 = vmatpush1.bf16.msra.mxu0 0
      %681 = vmatprep.subr.bf16.mxu0 0
      %682 = vmatpush1.bf16.msra.mxu0 0
      %683 = vmatprep.subr.bf16.mxu0 0
      %684 = vmatpush1.bf16.msra.mxu0 0
      %685 = vmatprep.mubr.bf16.mxu0 0
      %686 = vmatmul.mubr.bf16.gmra.mrb[0].mxu0 %v651
      %v687 = vpop.f32.mrb[0].mxu0
      %v688 = vadd.f32 0.0, %v687
      %v689 = vpop.f32.mrb[0].mxu0
      %v690 = vpop.f32.mrb[0].mxu0
      %v691 = vadd.f32 0.0, %v690
      %v692 = vpop.f32.mrb[0].mxu0
      %693 = vdwg.mxu0
      %v694 = vadd.f32 %v626, %v688
      %v695 = vadd.f32 %v627, %v691
      %696 = vrot.lane.b32.xlu0 %v283, 121
      %v697 = vpop.permute.xlu0 %696
      %698 = vrot.lane.b32.xlu0 %v283, 57
      %v699 = vpop.permute.xlu0 %698
      %vm700 = vcmask 465920
      %v703 = vsel %vm700, %v697, %v699
      %v705 = vlaneseq
      %v706 = vshrl.u32 %v705, 7
      %v707 = vsub.s32 3, %v706
      %v708 = vrot.slane %v294, %v707
      %v709 = vmul.bf16 %v703, %v708
      %s710 = scalar_lea.vmem %s259, 48
      %v711 = vld [vmem:[%s710] sm:$0xf]
      %v712 = vld [vmem:[%s710 + $0x4] sm:$0xf]
      %v715 = vunpack.c.l.b16 %v711
      %v716 = vunpack.c.l.b16 %v712
      %v717 = vpack.c.b16 %v716, %v715
      %v719 = vsel %vm328, %v717, 0
      %721 = vmatprep.subr.bf16.mxu0 0
      %722 = vmatpush1.bf16.msra.mxu0 %v709
      %723 = vmatprep.subr.bf16.mxu0 0
      %724 = vmatpush1.bf16.msra.mxu0 0
      %725 = vmatprep.subr.bf16.mxu0 0
      %726 = vmatpush1.bf16.msra.mxu0 0
      %727 = vmatprep.subr.bf16.mxu0 0
      %728 = vmatpush1.bf16.msra.mxu0 0
      %729 = vmatprep.subr.bf16.mxu0 0
      %730 = vmatpush1.bf16.msra.mxu0 0
      %731 = vmatprep.subr.bf16.mxu0 0
      %732 = vmatpush1.bf16.msra.mxu0 0
      %733 = vmatprep.subr.bf16.mxu0 0
      %734 = vmatpush1.bf16.msra.mxu0 0
      %735 = vmatprep.subr.bf16.mxu0 0
      %736 = vmatpush1.bf16.msra.mxu0 0
      %737 = vmatprep.subr.bf16.mxu0 0
      %738 = vmatpush1.bf16.msra.mxu0 0
      %739 = vmatprep.subr.bf16.mxu0 0
      %740 = vmatpush1.bf16.msra.mxu0 0
      %741 = vmatprep.subr.bf16.mxu0 0
      %742 = vmatpush1.bf16.msra.mxu0 0
      %743 = vmatprep.subr.bf16.mxu0 0
      %744 = vmatpush1.bf16.msra.mxu0 0
      %745 = vmatprep.subr.bf16.mxu0 0
      %746 = vmatpush1.bf16.msra.mxu0 0
      %747 = vmatprep.subr.bf16.mxu0 0
      %748 = vmatpush1.bf16.msra.mxu0 0
      %749 = vmatprep.subr.bf16.mxu0 0
      %750 = vmatpush1.bf16.msra.mxu0 0
      %751 = vmatprep.subr.bf16.mxu0 0
      %752 = vmatpush1.bf16.msra.mxu0 0
      %753 = vmatprep.mubr.bf16.mxu0 0
      %754 = vmatmul.mubr.bf16.gmra.mrb[0].mxu0 %v719
      %v755 = vpop.f32.mrb[0].mxu0
      %v756 = vadd.f32 0.0, %v755
      %v757 = vpop.f32.mrb[0].mxu0
      %v758 = vpop.f32.mrb[0].mxu0
      %v759 = vadd.f32 0.0, %v758
      %v760 = vpop.f32.mrb[0].mxu0
      %761 = vdwg.mxu0
      %v762 = vadd.f32 %v694, %v756
      %v763 = vadd.f32 %v695, %v759
      %764 = vrot.lane.b32.xlu0 %v283, 120
      %v765 = vpop.permute.xlu0 %764
      %766 = vrot.lane.b32.xlu0 %v283, 56
      %v767 = vpop.permute.xlu0 %766
      %vm768 = vcmask 457728
      %v771 = vsel %vm768, %v765, %v767
      %v773 = vlaneseq
      %v774 = vshrl.u32 %v773, 7
      %v775 = vsub.s32 3, %v774
      %v776 = vrot.slane %v313, %v775
      %v777 = vmul.bf16 %v771, %v776
      %s778 = scalar_lea.vmem %s259, 56
      %v779 = vld [vmem:[%s778] sm:$0xf]
      %v780 = vld [vmem:[%s778 + $0x4] sm:$0xf]
      %v783 = vunpack.c.l.b16 %v779
      %v784 = vunpack.c.l.b16 %v780
      %v785 = vpack.c.b16 %v784, %v783
      %v787 = vsel %vm328, %v785, 0
      %789 = vmatprep.subr.bf16.mxu0 0
      %790 = vmatpush1.bf16.msra.mxu0 %v777
      %791 = vmatprep.subr.bf16.mxu0 0
      %792 = vmatpush1.bf16.msra.mxu0 0
      %793 = vmatprep.subr.bf16.mxu0 0
      %794 = vmatpush1.bf16.msra.mxu0 0
      %795 = vmatprep.subr.bf16.mxu0 0
      %796 = vmatpush1.bf16.msra.mxu0 0
      %797 = vmatprep.subr.bf16.mxu0 0
      %798 = vmatpush1.bf16.msra.mxu0 0
      %799 = vmatprep.subr.bf16.mxu0 0
      %800 = vmatpush1.bf16.msra.mxu0 0
      %801 = vmatprep.subr.bf16.mxu0 0
      %802 = vmatpush1.bf16.msra.mxu0 0
      %803 = vmatprep.subr.bf16.mxu0 0
      %804 = vmatpush1.bf16.msra.mxu0 0
      %805 = vmatprep.subr.bf16.mxu0 0
      %806 = vmatpush1.bf16.msra.mxu0 0
      %807 = vmatprep.subr.bf16.mxu0 0
      %808 = vmatpush1.bf16.msra.mxu0 0
      %809 = vmatprep.subr.bf16.mxu0 0
      %810 = vmatpush1.bf16.msra.mxu0 0
      %811 = vmatprep.subr.bf16.mxu0 0
      %812 = vmatpush1.bf16.msra.mxu0 0
      %813 = vmatprep.subr.bf16.mxu0 0
      %814 = vmatpush1.bf16.msra.mxu0 0
      %815 = vmatprep.subr.bf16.mxu0 0
      %816 = vmatpush1.bf16.msra.mxu0 0
      %817 = vmatprep.subr.bf16.mxu0 0
      %818 = vmatpush1.bf16.msra.mxu0 0
      %819 = vmatprep.subr.bf16.mxu0 0
      %820 = vmatpush1.bf16.msra.mxu0 0
      %821 = vmatprep.mubr.bf16.mxu0 0
      %822 = vmatmul.mubr.bf16.gmra.mrb[0].mxu0 %v787
      %v823 = vpop.f32.mrb[0].mxu0
      %v824 = vadd.f32 0.0, %v823
      %v825 = vpop.f32.mrb[0].mxu0
      %v826 = vpop.f32.mrb[0].mxu0
      %v827 = vadd.f32 0.0, %v826
      %v828 = vpop.f32.mrb[0].mxu0
      %829 = vdwg.mxu0
      %v830 = vadd.f32 %v762, %v824
      %v831 = vadd.f32 %v763, %v827
      %832 = vrot.lane.b32.xlu0 %v283, 119
      %v833 = vpop.permute.xlu0 %832
      %834 = vrot.lane.b32.xlu0 %v283, 55
      %v835 = vpop.permute.xlu0 %834
      %vm836 = vcmask 449536
      %v839 = vsel %vm836, %v833, %v835
      %v842 = vpack.i.b16 %v278, %v278
      %v844 = vlaneseq
      %v845 = vshrl.u32 %v844, 7
      %v846 = vsub.s32 0, %v845
      %v847 = vrot.slane %v842, %v846
      %v848 = vmul.bf16 %v839, %v847
      %s849 = scalar_lea.vmem %s259, 64
      %v850 = vld [vmem:[%s849] sm:$0xf]
      %v851 = vld [vmem:[%s849 + $0x4] sm:$0xf]
      %v854 = vunpack.c.l.b16 %v850
      %v855 = vunpack.c.l.b16 %v851
      %v856 = vpack.c.b16 %v855, %v854
      %v858 = vsel %vm328, %v856, 0
      %860 = vmatprep.subr.bf16.mxu0 0
      %861 = vmatpush1.bf16.msra.mxu0 %v848
      %862 = vmatprep.subr.bf16.mxu0 0
      %863 = vmatpush1.bf16.msra.mxu0 0
      %864 = vmatprep.subr.bf16.mxu0 0
      %865 = vmatpush1.bf16.msra.mxu0 0
      %866 = vmatprep.subr.bf16.mxu0 0
      %867 = vmatpush1.bf16.msra.mxu0 0
      %868 = vmatprep.subr.bf16.mxu0 0
      %869 = vmatpush1.bf16.msra.mxu0 0
      %870 = vmatprep.subr.bf16.mxu0 0
      %871 = vmatpush1.bf16.msra.mxu0 0
      %872 = vmatprep.subr.bf16.mxu0 0
      %873 = vmatpush1.bf16.msra.mxu0 0
      %874 = vmatprep.subr.bf16.mxu0 0
      %875 = vmatpush1.bf16.msra.mxu0 0
      %876 = vmatprep.subr.bf16.mxu0 0
      %877 = vmatpush1.bf16.msra.mxu0 0
      %878 = vmatprep.subr.bf16.mxu0 0
      %879 = vmatpush1.bf16.msra.mxu0 0
      %880 = vmatprep.subr.bf16.mxu0 0
      %881 = vmatpush1.bf16.msra.mxu0 0
      %882 = vmatprep.subr.bf16.mxu0 0
      %883 = vmatpush1.bf16.msra.mxu0 0
      %884 = vmatprep.subr.bf16.mxu0 0
      %885 = vmatpush1.bf16.msra.mxu0 0
      %886 = vmatprep.subr.bf16.mxu0 0
      %887 = vmatpush1.bf16.msra.mxu0 0
      %888 = vmatprep.subr.bf16.mxu0 0
      %889 = vmatpush1.bf16.msra.mxu0 0
      %890 = vmatprep.subr.bf16.mxu0 0
      %891 = vmatpush1.bf16.msra.mxu0 0
      %892 = vmatprep.mubr.bf16.mxu0 0
      %893 = vmatmul.mubr.bf16.gmra.mrb[0].mxu0 %v858
      %v894 = vpop.f32.mrb[0].mxu0
      %v895 = vadd.f32 0.0, %v894
      %v896 = vpop.f32.mrb[0].mxu0
      %v897 = vpop.f32.mrb[0].mxu0
      %v898 = vadd.f32 0.0, %v897
      %v899 = vpop.f32.mrb[0].mxu0
      %900 = vdwg.mxu0
      %v901 = vadd.f32 %v830, %v895
      %v902 = vadd.f32 %v831, %v898
      %v903 = vld [vmem:[%s264] sm:$0xff]
      %v904 = vld [vmem:[%s264 + $0x8] sm:$0xff]
      %906 = vset.pattern.permute.xlu0 0
      %907 = vperm.xlu0 %906, %v903
      %v908 = vpop.permute.xlu0 %907
      %911 = vset.pattern.permute.xlu0 0
      %912 = vperm.xlu0 %911, %v904
      %v913 = vpop.permute.xlu0 %912
      %v915 = vadd.f32 %v901, %v908
      %v916 = vadd.f32 %v902, %v913
      %v917 = vmax.f32 %v915, 0.0
      %v918 = vmax.f32 %v916, 0.0
      %vm919 = vcmask 523264
      %920 = vst.msk [vmem:[%s273] sm:$0xff] %vm919, %v917
      %921 = vst.msk [vmem:[%s273 + $0x8] sm:$0xff] %vm919, %v918
      %p922 = scmp.lt.s32.totalorder %s19, 7
      %s923 = scalar_select %p922, %s19, 7
      %p924 = scmp.lt.s32.totalorder %s20, 1
      %s925 = scalar_select %p924, %s20, 1
      %s926 = smul.addr %s925, 2
      %s927 = smul.addr %s923, 4
      %s928 = sadd.s32 %s926, %s927
      %s929 = smul.addr %s928, 8
      %s930 = scalar_lea.vmem %s4, %s929
      // Predicated region
      $region37: #{conv_bimla_forward.3} parent=35 // pred_check
        %p931 = pneg %p148
      $region38: #{conv_bimla_forward.3} parent=35 // pred_check_branch
        %933 = sbr.rel (%p931) target = $region40
      $region39: #{conv_bimla_forward.3} parent=35 // pred_region
        _
      $region40: #{conv_bimla_forward.3} parent=35 // pred_fallthru
        _
    $region36: #{conv_bimla_forward.3} parent=5 // pred_fallthru
      _
    %p934 = scmp.le.s32.totalorder 2, %s10
    // Predicated region
    $region41: #{conv_bimla_forward.3} parent=5 // pred_check
      %p935 = pneg %p934
    $region42: #{conv_bimla_forward.3} parent=5 // pred_check_branch
      %937 = sbr.rel (%p935) target = $region44
    $region43: #{conv_bimla_forward.3} parent=5 // pred_region
      %s938 = ssub.s32 %s10, 2
      // Predicated region
      $region45: #{conv_bimla_forward.3} parent=43 // pred_check
        %p939 = pneg %p154
      $region46: #{conv_bimla_forward.3} parent=43 // pred_check_branch
        %941 = sbr.rel (%p939) target = $region48
      $region47: #{conv_bimla_forward.3} parent=43 // pred_region
        %p942 = scmp.lt.s32.totalorder %s21, 7
        %s943 = scalar_select %p942, %s21, 7
        %p944 = scmp.lt.s32.totalorder %s22, 1
        %s945 = scalar_select %p944, %s22, 1
        %s946 = smul.addr %s945, 2
        %s947 = smul.addr %s943, 4
        %s948 = sadd.s32 %s946, %s947
        %s949 = smul.addr %s948, 8
        %s950 = scalar_lea.vmem %s4, %s949
      $region48: #{conv_bimla_forward.3} parent=43 // pred_fallthru
        _
    $region44: #{conv_bimla_forward.3} parent=5 // pred_fallthru
      _
  $region6: #{conv_bimla_forward.3} parent=0 // loop_footer
    %s14 = sadd.s32 1, %s10
  $region7: #{conv_bimla_forward.3} parent=0 // loop_footer_branch
    %9 = sbr.rel target = $region3
  $region8: #{conv_bimla_forward.3} parent=0 // loop_exit
    _

</llo_original>
